<compile_context>
chip_gen: v6e
topology: v6e:2x2x1
jax: 0.10.0
libtpu: 0.0.40
codegen_flags: <defaults>
</compile_context>

<pallas_src>
import functools

import jax
import jax.numpy as jnp
from jax.experimental import pallas as pl
from jax.experimental.pallas import tpu as pltpu

LEAKY_SLOPE = 0.2
IN_EPS = 1e-5          # nn.InstanceNorm2d default eps
_PAD = 128             # lane-aligned left/right margin of the padded spatial scratch


def _genblock_kernel(x_ref, n1_ref, n2_ref,
                     w1_ref, b1_ref, nw1_ref, ss1_ref, sb1_ref,
                     w2_ref, b2_ref, nw2_ref, ss2_ref, sb2_ref,
                     out_ref, xpad_ref, patch_ref, *, h, w, c_pad):
    """Both GenBlock stages (conv -> +bias -> +noise -> LeakyReLU -> AdaIN)."""
    hw = h * w
    inv_hw = 1.0 / hw

    # Column index of every flattened pixel (lane axis) -- masks the dx=+-1
    # conv taps at the left/right image borders.
    col = jax.lax.broadcasted_iota(jnp.int32, (1, hw), 1) % w
    left_ok = col >= 1          # valid positions for dx = -1 taps
    right_ok = col <= w - 2     # valid positions for dx = +1 taps

    # Zero the spatial margins of the padded scratch.  The margins absorb the
    # dy=+-1 row overhangs (top/bottom "padding=1" rows).  Done unconditionally
    # per invocation so it is safe under megacore "parallel" partitioning.
    zeros_margin = jnp.zeros((c_pad, _PAD), jnp.float32)
    xpad_ref[:, 0:_PAD] = zeros_margin
    xpad_ref[:, _PAD + hw:_PAD + hw + _PAD] = zeros_margin

    def stage(x, w_ref, b_ref, nw_ref, noise_ref, ss_ref, sb_ref):
        # ---- WSConv2d(3x3, pad=1) as a single fused matmul ------------------
        xpad_ref[:, _PAD:_PAD + hw] = x                       # aligned store
        for k in range(9):                                    # static unroll
            dy, dx = k // 3 - 1, k % 3 - 1
            d = dy * w + dx                                   # flat spatial shift
            tap = xpad_ref[:, pl.ds(_PAD + d, hw)]            # shifted window
            if dx == -1:
                tap = jnp.where(left_ok, tap, 0.0)
            elif dx == 1:
                tap = jnp.where(right_ok, tap, 0.0)
            patch_ref[pl.ds(k * c_pad, c_pad), :] = tap       # 8-aligned rows
        # One MXU push: (Cout, 9*Cpad) @ (9*Cpad, HW); default (bf16) precision,
        # f32 accumulation.  Conv scale is already folded into the weights.
        y = jnp.dot(w_ref[...], patch_ref[...],
                    preferred_element_type=jnp.float32)       # (Cout, HW)

        # ---- conv bias + InjectNoise + LeakyReLU -----------------------------
        y = y + b_ref[...] + nw_ref[...] * noise_ref[0]       # (Cout,1)*(1,HW)
        y = jnp.where(y > 0, y, LEAKY_SLOPE * y)

        # ---- InstanceNorm2d (single-pass stats) + AdaIN style affine ---------
        mean = jnp.sum(y, axis=1, keepdims=True) * inv_hw     # (Cout, 1)
        ex2 = jnp.sum(y * y, axis=1, keepdims=True) * inv_hw
        var = ex2 - mean * mean
        yn = (y - mean) * jax.lax.rsqrt(var + IN_EPS)
        return ss_ref[0] * yn + sb_ref[0]                     # (Cout, HW)

    y1 = stage(x_ref[0], w1_ref, b1_ref, nw1_ref, n1_ref, ss1_ref, sb1_ref)
    y2 = stage(y1, w2_ref, b2_ref, nw2_ref, n2_ref, ss2_ref, sb2_ref)
    out_ref[0] = y2


def _prep_conv_weight(conv_w, true_cin, c_pad):
    """(Cout, Cin, 3, 3) -> (Cout, 9*Cpad) with the WSConv2d scale folded in."""
    c_out = conv_w.shape[0]
    scale = (2.0 / (true_cin * 9)) ** 0.5
    wt = jnp.transpose(conv_w, (0, 2, 3, 1)).reshape(c_out, 9, true_cin) * scale
    if true_cin < c_pad:
        wt = jnp.pad(wt, ((0, 0), (0, 0), (0, c_pad - true_cin)))
    return wt.reshape(c_out, 9 * c_pad)


def genblock_forward(x_nchw, w_latent, params, noise1_nchw, noise2_nchw):
    """GenBlock.forward(x, w). x: (N,Cin,H,W) f32, w: (N, w_dim). Returns NCHW."""
    n, c_in, h, w = x_nchw.shape
    c_out = params['conv1_w'].shape[0]
    w_dim = w_latent.shape[-1]
    hw = h * w
    assert c_out % 8 == 0 and c_in <= c_out, "kernel assumes c_in <= c_out, c_out % 8 == 0"
    assert hw % 128 == 0, "kernel assumes H*W is a multiple of 128"
    c_pad = c_out  # pad input channels up to c_out (sublane-aligned, shared scratch)

    # NCHW is already (N, C, H*W) after a reshape -- no transposes needed.
    x = x_nchw.reshape(n, c_in, hw)
    if c_in < c_pad:
        x = jnp.pad(x, ((0, 0), (0, c_pad - c_in), (0, 0)))
    n1 = noise1_nchw.reshape(n, 1, hw)
    n2 = noise2_nchw.reshape(n, 1, hw)

    # Fold the WSConv scale into the conv weights (zero columns for pad channels).
    w1 = _prep_conv_weight(params['conv1_w'], c_in, c_pad)
    w2 = _prep_conv_weight(params['conv2_w'], c_out, c_pad)

    # Precompute the AdaIN style affines (WSLinear) for all N as tiny XLA
    # matmuls; the kernel only consumes per-batch (Cout, 1) vectors.
    ws_scale = (2.0 / w_dim) ** 0.5

    def style(lin_w, lin_b):
        out = jnp.dot(w_latent, (lin_w * ws_scale).T,
                      precision=jax.lax.Precision.HIGHEST) + lin_b
        return out.reshape(n, c_out, 1)

    ss1, sb1 = style(params['ss1_w'], params['ss1_b']), style(params['sb1_w'], params['sb1_b'])
    ss2, sb2 = style(params['ss2_w'], params['ss2_b']), style(params['sb2_w'], params['sb2_b'])

    b1 = params['conv1_b'].reshape(c_out, 1)
    b2 = params['conv2_b'].reshape(c_out, 1)
    nw1 = params['noise1_w'].reshape(c_out, 1)
    nw2 = params['noise2_w'].reshape(c_out, 1)

    kern = functools.partial(_genblock_kernel, h=h, w=w, c_pad=c_pad)
    per_batch = lambda i: (i, 0, 0)
    shared = lambda i: (0, 0)

    out = pl.pallas_call(
        kern,
        out_shape=jax.ShapeDtypeStruct((n, c_out, hw), jnp.float32),
        grid_spec=pltpu.PrefetchScalarGridSpec(
            num_scalar_prefetch=0,
            grid=(n,),
            in_specs=[
                pl.BlockSpec((1, c_pad, hw), per_batch),      # x (channel-padded)
                pl.BlockSpec((1, 1, hw), per_batch),          # noise 1
                pl.BlockSpec((1, 1, hw), per_batch),          # noise 2
                pl.BlockSpec((c_out, 9 * c_pad), shared),     # conv1 weight (scale folded)
                pl.BlockSpec((c_out, 1), shared),             # conv1 bias
                pl.BlockSpec((c_out, 1), shared),             # noise1 weight
                pl.BlockSpec((1, c_out, 1), per_batch),       # style scale 1
                pl.BlockSpec((1, c_out, 1), per_batch),       # style bias 1
                pl.BlockSpec((c_out, 9 * c_pad), shared),     # conv2 weight (scale folded)
                pl.BlockSpec((c_out, 1), shared),             # conv2 bias
                pl.BlockSpec((c_out, 1), shared),             # noise2 weight
                pl.BlockSpec((1, c_out, 1), per_batch),       # style scale 2
                pl.BlockSpec((1, c_out, 1), per_batch),       # style bias 2
            ],
            out_specs=pl.BlockSpec((1, c_out, hw), per_batch),
            scratch_shapes=[
                pltpu.VMEM((c_pad, hw + 2 * _PAD), jnp.float32),  # padded spatial buffer
                pltpu.VMEM((9 * c_pad, hw), jnp.float32),         # fused im2col patches
            ],
        ),
        compiler_params=pltpu.CompilerParams(dimension_semantics=("parallel",)),
    )(x, n1, n2, w1, b1, nw1, ss1, sb1, w2, b2, nw2, ss2, sb2)

    return out.reshape(n, c_out, h, w)


# ---------------- pure-JAX reference (mirrors the PyTorch module) ----------------
def genblock_reference(x, w_latent, params, noise1, noise2):
    def ws_conv(x, weight, bias, c_in):
        scale = (2.0 / (c_in * 9)) ** 0.5
        y = jax.lax.conv_general_dilated(
            x * scale, weight, (1, 1), ((1, 1), (1, 1)),
            dimension_numbers=('NCHW', 'OIHW', 'NCHW'),
            precision=jax.lax.Precision.HIGHEST)
        return y + bias[None, :, None, None]

    def ws_linear(wl, weight, bias):
        scale = (2.0 / weight.shape[1]) ** 0.5
        return jnp.dot(wl * scale, weight.T,
                       precision=jax.lax.Precision.HIGHEST) + bias

    def adain(x, wl, ssw, ssb, sbw, sbb):
        mean = x.mean(axis=(2, 3), keepdims=True)
        var = ((x - mean) ** 2).mean(axis=(2, 3), keepdims=True)
        xn = (x - mean) * jax.lax.rsqrt(var + IN_EPS)
        ss = ws_linear(wl, ssw, ssb)[:, :, None, None]
        sb = ws_linear(wl, sbw, sbb)[:, :, None, None]
        return ss * xn + sb

    leaky = lambda t: jnp.where(t > 0, t, LEAKY_SLOPE * t)
    p = params
    h1 = ws_conv(x, p['conv1_w'], p['conv1_b'], x.shape[1])
    h1 = h1 + p['noise1_w'][None, :, None, None] * noise1
    h1 = adain(leaky(h1), w_latent, p['ss1_w'], p['ss1_b'], p['sb1_w'], p['sb1_b'])
    h2 = ws_conv(h1, p['conv2_w'], p['conv2_b'], h1.shape[1])
    h2 = h2 + p['noise2_w'][None, :, None, None] * noise2
    h2 = adain(leaky(h2), w_latent, p['ss2_w'], p['ss2_b'], p['sb2_w'], p['sb2_b'])
    return h2


if __name__ == "__main__":
    N, C_IN, C_OUT, W_DIM, H, W = 2, 4, 8, 32, 16, 16

    key = jax.random.PRNGKey(0)
    ks = jax.random.split(key, 16)
    # Shapes follow GenBlock.__init__ (torch zero-inits biases / noise weights;
    # small random values are used here so every code path is exercised).
    params = {
        'conv1_w': jax.random.normal(ks[0], (C_OUT, C_IN, 3, 3), jnp.float32),
        'conv1_b': 0.1 * jax.random.normal(ks[1], (C_OUT,), jnp.float32),
        'conv2_w': jax.random.normal(ks[2], (C_OUT, C_OUT, 3, 3), jnp.float32),
        'conv2_b': 0.1 * jax.random.normal(ks[3], (C_OUT,), jnp.float32),
        'noise1_w': 0.1 * jax.random.normal(ks[4], (C_OUT,), jnp.float32),
        'noise2_w': 0.1 * jax.random.normal(ks[5], (C_OUT,), jnp.float32),
        'ss1_w': jax.random.normal(ks[6], (C_OUT, W_DIM), jnp.float32),
        'ss1_b': 0.1 * jax.random.normal(ks[7], (C_OUT,), jnp.float32),
        'sb1_w': jax.random.normal(ks[8], (C_OUT, W_DIM), jnp.float32),
        'sb1_b': 0.1 * jax.random.normal(ks[9], (C_OUT,), jnp.float32),
        'ss2_w': jax.random.normal(ks[10], (C_OUT, W_DIM), jnp.float32),
        'ss2_b': 0.1 * jax.random.normal(ks[11], (C_OUT,), jnp.float32),
        'sb2_w': jax.random.normal(ks[12], (C_OUT, W_DIM), jnp.float32),
        'sb2_b': 0.1 * jax.random.normal(ks[13], (C_OUT,), jnp.float32),
    }

    x = jax.random.normal(ks[14], (N, C_IN, H, W), jnp.float32)       # NCHW
    w_latent = jax.random.normal(ks[15], (N, W_DIM), jnp.float32)
    # torch draws noise inside forward(); here drawn deterministically up front.
    kn = jax.random.split(jax.random.PRNGKey(1), 2)
    noise1 = jax.random.normal(kn[0], (N, 1, H, W), jnp.float32)
    noise2 = jax.random.normal(kn[1], (N, 1, H, W), jnp.float32)

    fwd = jax.jit(genblock_forward)
    out = jax.block_until_ready(fwd(x, w_latent, params, noise1, noise2))
    ref = jax.block_until_ready(genblock_reference(x, w_latent, params, noise1, noise2))

    assert out.shape == (N, C_OUT, H, W), out.shape
    max_err = float(jnp.max(jnp.abs(out - ref)))
    rel_l2 = float(jnp.linalg.norm(out - ref) / jnp.linalg.norm(ref))
    # Kernel conv matmuls run at default MXU precision (bf16 inputs, f32 accum)
    # per the perf guidance; the reference conv is exact f32, hence the loose
    # absolute tolerance paired with a tight relative-L2 check.
    assert max_err < 1e-1 and rel_l2 < 2e-2, (max_err, rel_l2)
    print("KERNEL_OK")
</pallas_src>

<mosaic_0001>
module attributes {stable_mosaic.version = 11 : i64} {
  func.func @_genblock_kernel(%arg0: i32, %arg1: memref<1x8x256xf32, #tpu.memory_space<vmem>>, %arg2: memref<1x1x256xf32, #tpu.memory_space<vmem>>, %arg3: memref<1x1x256xf32, #tpu.memory_space<vmem>>, %arg4: memref<8x72xf32, #tpu.memory_space<vmem>>, %arg5: memref<8x1xf32, #tpu.memory_space<vmem>>, %arg6: memref<8x1xf32, #tpu.memory_space<vmem>>, %arg7: memref<1x8x1xf32, #tpu.memory_space<vmem>>, %arg8: memref<1x8x1xf32, #tpu.memory_space<vmem>>, %arg9: memref<8x72xf32, #tpu.memory_space<vmem>>, %arg10: memref<8x1xf32, #tpu.memory_space<vmem>>, %arg11: memref<8x1xf32, #tpu.memory_space<vmem>>, %arg12: memref<1x8x1xf32, #tpu.memory_space<vmem>>, %arg13: memref<1x8x1xf32, #tpu.memory_space<vmem>>, %arg14: memref<1x8x256xf32, #tpu.memory_space<vmem>>, %arg15: memref<8x512xf32, #tpu.memory_space<vmem>>, %arg16: memref<72x256xf32, #tpu.memory_space<vmem>>) attributes {dimension_semantics = [#tpu.dimension_semantics<parallel>], iteration_bounds = array<i64: 2>, scalar_prefetch = 0 : i64, scratch_operands = 2 : i64, tpu.core_type = #tpu.core_type<tc>, window_params = [{transform_indices = @transform_0, window_bounds = array<i64: 1, 8, 256>}, {transform_indices = @transform_1, window_bounds = array<i64: 1, 1, 256>}, {transform_indices = @transform_2, window_bounds = array<i64: 1, 1, 256>}, {pipeline_mode = #tpu.pipeline_mode<synchronous>, transform_indices = @transform_3, window_bounds = array<i64: 8, 72>}, {pipeline_mode = #tpu.pipeline_mode<synchronous>, transform_indices = @transform_4, window_bounds = array<i64: 8, 1>}, {pipeline_mode = #tpu.pipeline_mode<synchronous>, transform_indices = @transform_5, window_bounds = array<i64: 8, 1>}, {transform_indices = @transform_6, window_bounds = array<i64: 1, 8, 1>}, {transform_indices = @transform_7, window_bounds = array<i64: 1, 8, 1>}, {pipeline_mode = #tpu.pipeline_mode<synchronous>, transform_indices = @transform_8, window_bounds = array<i64: 8, 72>}, {pipeline_mode = #tpu.pipeline_mode<synchronous>, transform_indices = @transform_9, window_bounds = array<i64: 8, 1>}, {pipeline_mode = #tpu.pipeline_mode<synchronous>, transform_indices = @transform_10, window_bounds = array<i64: 8, 1>}, {transform_indices = @transform_11, window_bounds = array<i64: 1, 8, 1>}, {transform_indices = @transform_12, window_bounds = array<i64: 1, 8, 1>}, {transform_indices = @transform_13, window_bounds = array<i64: 1, 8, 256>}]} {
    %0 = tpu.iota {dimensions = array<i32: 1>} : vector<1x256xi32>
    %c16_i32 = arith.constant 16 : i32
    %c0_i32 = arith.constant 0 : i32
    %1 = arith.cmpi eq, %c16_i32, %c0_i32 : i32
    %c1_i32 = arith.constant 1 : i32
    %2 = arith.select %1, %c1_i32, %c16_i32 : i32
    %3 = vector.broadcast %2 : i32 to vector<1x256xi32>
    %4 = arith.remsi %0, %3 : vector<1x256xi32>
    %c0_i32_0 = arith.constant 0 : i32
    %5 = vector.broadcast %c0_i32_0 : i32 to vector<1x256xi32>
    %6 = arith.cmpi ne, %4, %5 : vector<1x256xi32>
    %c0_i32_1 = arith.constant 0 : i32
    %7 = vector.broadcast %c0_i32_1 : i32 to vector<1x256xi32>
    %8 = arith.cmpi slt, %4, %7 : vector<1x256xi32>
    %c0_i32_2 = arith.constant 0 : i32
    %9 = arith.cmpi slt, %2, %c0_i32_2 : i32
    %10 = vector.broadcast %9 : i1 to vector<1x256xi1>
    %11 = vector.broadcast %10 : vector<1x256xi1> to vector<1x256xi1>
    %12 = arith.xori %8, %11 : vector<1x256xi1>
    %13 = arith.andi %12, %6 : vector<1x256xi1>
    %14 = vector.broadcast %2 : i32 to vector<1x256xi32>
    %15 = arith.addi %4, %14 : vector<1x256xi32>
    %16 = arith.select %13, %15, %4 : vector<1x256xi1>, vector<1x256xi32>
    %c1_i32_3 = arith.constant 1 : i32
    %17 = vector.broadcast %c1_i32_3 : i32 to vector<1x256xi32>
    %18 = arith.cmpi sge, %16, %17 : vector<1x256xi32>
    %c14_i32 = arith.constant 14 : i32
    %19 = vector.broadcast %c14_i32 : i32 to vector<1x256xi32>
    %20 = arith.cmpi sle, %16, %19 : vector<1x256xi32>
    %cst = arith.constant 0.000000e+00 : f32
    %21 = vector.broadcast %cst : f32 to vector<8x128xf32>
    %c0 = arith.constant 0 : index
    %c0_4 = arith.constant 0 : index
    %22 = vector.load %arg15[%c0, %c0_4] : memref<8x512xf32, #tpu.memory_space<vmem>>, vector<8x128xf32>
    tpu.vector_store %arg15[%c0, %c0_4], %21 {strides = array<i32>} : memref<8x512xf32, #tpu.memory_space<vmem>>, vector<8x128xf32>,
    %c0_5 = arith.constant 0 : index
    %c384 = arith.constant 384 : index
    %23 = vector.load %arg15[%c0_5, %c384] : memref<8x512xf32, #tpu.memory_space<vmem>>, vector<8x128xf32>
    tpu.vector_store %arg15[%c0_5, %c384], %21 {strides = array<i32>} : memref<8x512xf32, #tpu.memory_space<vmem>>, vector<8x128xf32>,
    %c0_6 = arith.constant 0 : index
    %c0_7 = arith.constant 0 : index
    %c0_8 = arith.constant 0 : index
    %24 = vector.load %arg1[%c0_6, %c0_7, %c0_8] : memref<1x8x256xf32, #tpu.memory_space<vmem>>, vector<1x8x256xf32>
    %25 = vector.shape_cast %24 : vector<1x8x256xf32> to vector<8x256xf32>
    %c0_9 = arith.constant 0 : index
    %c128 = arith.constant 128 : index
    %26 = vector.load %arg15[%c0_9, %c128] : memref<8x512xf32, #tpu.memory_space<vmem>>, vector<8x256xf32>
    tpu.vector_store %arg15[%c0_9, %c128], %25 {strides = array<i32>} : memref<8x512xf32, #tpu.memory_space<vmem>>, vector<8x256xf32>,
    %c0_10 = arith.constant 0 : index
    %c111 = arith.constant 111 : index
    %27 = vector.load %arg15[%c0_10, %c111] : memref<8x512xf32, #tpu.memory_space<vmem>>, vector<8x256xf32>
    %cst_11 = arith.constant 0.000000e+00 : f32
    %28 = vector.shape_cast %18 : vector<1x256xi1> to vector<1x256xi1>
    %29 = vector.broadcast %28 : vector<1x256xi1> to vector<8x256xi1>
    %30 = vector.broadcast %cst_11 : f32 to vector<8x256xf32>
    %31 = arith.select %29, %27, %30 : vector<8x256xi1>, vector<8x256xf32>
    %c0_12 = arith.constant 0 : index
    %c0_13 = arith.constant 0 : index
    %32 = vector.load %arg16[%c0_12, %c0_13] : memref<72x256xf32, #tpu.memory_space<vmem>>, vector<8x256xf32>
    tpu.vector_store %arg16[%c0_12, %c0_13], %31 {strides = array<i32>} : memref<72x256xf32, #tpu.memory_space<vmem>>, vector<8x256xf32>,
    %c0_14 = arith.constant 0 : index
    %c112 = arith.constant 112 : index
    %33 = vector.load %arg15[%c0_14, %c112] : memref<8x512xf32, #tpu.memory_space<vmem>>, vector<8x256xf32>
    %c8 = arith.constant 8 : index
    %c0_15 = arith.constant 0 : index
    %34 = vector.load %arg16[%c8, %c0_15] : memref<72x256xf32, #tpu.memory_space<vmem>>, vector<8x256xf32>
    tpu.vector_store %arg16[%c8, %c0_15], %33 {strides = array<i32>} : memref<72x256xf32, #tpu.memory_space<vmem>>, vector<8x256xf32>,
    %c0_16 = arith.constant 0 : index
    %c113 = arith.constant 113 : index
    %35 = vector.load %arg15[%c0_16, %c113] : memref<8x512xf32, #tpu.memory_space<vmem>>, vector<8x256xf32>
    %cst_17 = arith.constant 0.000000e+00 : f32
    %36 = vector.shape_cast %20 : vector<1x256xi1> to vector<1x256xi1>
    %37 = vector.broadcast %36 : vector<1x256xi1> to vector<8x256xi1>
    %38 = vector.broadcast %cst_17 : f32 to vector<8x256xf32>
    %39 = arith.select %37, %35, %38 : vector<8x256xi1>, vector<8x256xf32>
    %c16 = arith.constant 16 : index
    %c0_18 = arith.constant 0 : index
    %40 = vector.load %arg16[%c16, %c0_18] : memref<72x256xf32, #tpu.memory_space<vmem>>, vector<8x256xf32>
    tpu.vector_store %arg16[%c16, %c0_18], %39 {strides = array<i32>} : memref<72x256xf32, #tpu.memory_space<vmem>>, vector<8x256xf32>,
    %c0_19 = arith.constant 0 : index
    %c127 = arith.constant 127 : index
    %41 = vector.load %arg15[%c0_19, %c127] : memref<8x512xf32, #tpu.memory_space<vmem>>, vector<8x256xf32>
    %cst_20 = arith.constant 0.000000e+00 : f32
    %42 = vector.shape_cast %18 : vector<1x256xi1> to vector<1x256xi1>
    %43 = vector.broadcast %42 : vector<1x256xi1> to vector<8x256xi1>
    %44 = vector.broadcast %cst_20 : f32 to vector<8x256xf32>
    %45 = arith.select %43, %41, %44 : vector<8x256xi1>, vector<8x256xf32>
    %c24 = arith.constant 24 : index
    %c0_21 = arith.constant 0 : index
    %46 = vector.load %arg16[%c24, %c0_21] : memref<72x256xf32, #tpu.memory_space<vmem>>, vector<8x256xf32>
    tpu.vector_store %arg16[%c24, %c0_21], %45 {strides = array<i32>} : memref<72x256xf32, #tpu.memory_space<vmem>>, vector<8x256xf32>,
    %c0_22 = arith.constant 0 : index
    %c128_23 = arith.constant 128 : index
    %47 = vector.load %arg15[%c0_22, %c128_23] : memref<8x512xf32, #tpu.memory_space<vmem>>, vector<8x256xf32>
    %c32 = arith.constant 32 : index
    %c0_24 = arith.constant 0 : index
    %48 = vector.load %arg16[%c32, %c0_24] : memref<72x256xf32, #tpu.memory_space<vmem>>, vector<8x256xf32>
    tpu.vector_store %arg16[%c32, %c0_24], %47 {strides = array<i32>} : memref<72x256xf32, #tpu.memory_space<vmem>>, vector<8x256xf32>,
    %c0_25 = arith.constant 0 : index
    %c129 = arith.constant 129 : index
    %49 = vector.load %arg15[%c0_25, %c129] : memref<8x512xf32, #tpu.memory_space<vmem>>, vector<8x256xf32>
    %cst_26 = arith.constant 0.000000e+00 : f32
    %50 = vector.shape_cast %20 : vector<1x256xi1> to vector<1x256xi1>
    %51 = vector.broadcast %50 : vector<1x256xi1> to vector<8x256xi1>
    %52 = vector.broadcast %cst_26 : f32 to vector<8x256xf32>
    %53 = arith.select %51, %49, %52 : vector<8x256xi1>, vector<8x256xf32>
    %c40 = arith.constant 40 : index
    %c0_27 = arith.constant 0 : index
    %54 = vector.load %arg16[%c40, %c0_27] : memref<72x256xf32, #tpu.memory_space<vmem>>, vector<8x256xf32>
    tpu.vector_store %arg16[%c40, %c0_27], %53 {strides = array<i32>} : memref<72x256xf32, #tpu.memory_space<vmem>>, vector<8x256xf32>,
    %c0_28 = arith.constant 0 : index
    %c143 = arith.constant 143 : index
    %55 = vector.load %arg15[%c0_28, %c143] : memref<8x512xf32, #tpu.memory_space<vmem>>, vector<8x256xf32>
    %cst_29 = arith.constant 0.000000e+00 : f32
    %56 = vector.shape_cast %18 : vector<1x256xi1> to vector<1x256xi1>
    %57 = vector.broadcast %56 : vector<1x256xi1> to vector<8x256xi1>
    %58 = vector.broadcast %cst_29 : f32 to vector<8x256xf32>
    %59 = arith.select %57, %55, %58 : vector<8x256xi1>, vector<8x256xf32>
    %c48 = arith.constant 48 : index
    %c0_30 = arith.constant 0 : index
    %60 = vector.load %arg16[%c48, %c0_30] : memref<72x256xf32, #tpu.memory_space<vmem>>, vector<8x256xf32>
    tpu.vector_store %arg16[%c48, %c0_30], %59 {strides = array<i32>} : memref<72x256xf32, #tpu.memory_space<vmem>>, vector<8x256xf32>,
    %c0_31 = arith.constant 0 : index
    %c144 = arith.constant 144 : index
    %61 = vector.load %arg15[%c0_31, %c144] : memref<8x512xf32, #tpu.memory_space<vmem>>, vector<8x256xf32>
    %c56 = arith.constant 56 : index
    %c0_32 = arith.constant 0 : index
    %62 = vector.load %arg16[%c56, %c0_32] : memref<72x256xf32, #tpu.memory_space<vmem>>, vector<8x256xf32>
    tpu.vector_store %arg16[%c56, %c0_32], %61 {strides = array<i32>} : memref<72x256xf32, #tpu.memory_space<vmem>>, vector<8x256xf32>,
    %c0_33 = arith.constant 0 : index
    %c145 = arith.constant 145 : index
    %63 = vector.load %arg15[%c0_33, %c145] : memref<8x512xf32, #tpu.memory_space<vmem>>, vector<8x256xf32>
    %cst_34 = arith.constant 0.000000e+00 : f32
    %64 = vector.shape_cast %20 : vector<1x256xi1> to vector<1x256xi1>
    %65 = vector.broadcast %64 : vector<1x256xi1> to vector<8x256xi1>
    %66 = vector.broadcast %cst_34 : f32 to vector<8x256xf32>
    %67 = arith.select %65, %63, %66 : vector<8x256xi1>, vector<8x256xf32>
    %c64 = arith.constant 64 : index
    %c0_35 = arith.constant 0 : index
    %68 = vector.load %arg16[%c64, %c0_35] : memref<72x256xf32, #tpu.memory_space<vmem>>, vector<8x256xf32>
    tpu.vector_store %arg16[%c64, %c0_35], %67 {strides = array<i32>} : memref<72x256xf32, #tpu.memory_space<vmem>>, vector<8x256xf32>,
    %c0_36 = arith.constant 0 : index
    %c0_37 = arith.constant 0 : index
    %69 = vector.load %arg4[%c0_36, %c0_37] : memref<8x72xf32, #tpu.memory_space<vmem>>, vector<8x72xf32>
    %c0_38 = arith.constant 0 : index
    %c0_39 = arith.constant 0 : index
    %70 = vector.load %arg16[%c0_38, %c0_39] : memref<72x256xf32, #tpu.memory_space<vmem>>, vector<72x256xf32>
    %cst_40 = arith.constant dense<0.000000e+00> : vector<8x256xf32>
    %71 = tpu.matmul %69, %70, %cst_40 {dimension_numbers = #tpu.dot_dimension_numbers<[1], [0], [0], [1], [0, 0, 1, 1], [], []>} : vector<8x72xf32>, vector<72x256xf32>, vector<8x256xf32> -> vector<8x256xf32>
    %c0_41 = arith.constant 0 : index
    %c0_42 = arith.constant 0 : index
    %72 = vector.load %arg5[%c0_41, %c0_42] : memref<8x1xf32, #tpu.memory_space<vmem>>, vector<8x1xf32>
    %73 = vector.broadcast %72 : vector<8x1xf32> to vector<8x256xf32>
    %74 = arith.addf %71, %73 : vector<8x256xf32>
    %c0_43 = arith.constant 0 : index
    %c0_44 = arith.constant 0 : index
    %75 = vector.load %arg6[%c0_43, %c0_44] : memref<8x1xf32, #tpu.memory_space<vmem>>, vector<8x1xf32>
    %c0_45 = arith.constant 0 : index
    %c0_46 = arith.constant 0 : index
    %c0_47 = arith.constant 0 : index
    %76 = vector.load %arg2[%c0_45, %c0_46, %c0_47] : memref<1x1x256xf32, #tpu.memory_space<vmem>>, vector<1x1x256xf32>
    %77 = vector.shape_cast %76 : vector<1x1x256xf32> to vector<1x256xf32>
    %78 = vector.broadcast %75 : vector<8x1xf32> to vector<8x256xf32>
    %79 = vector.broadcast %77 : vector<1x256xf32> to vector<8x256xf32>
    %80 = arith.mulf %78, %79 : vector<8x256xf32>
    %81 = arith.addf %74, %80 : vector<8x256xf32>
    %cst_48 = arith.constant 0.000000e+00 : f32
    %82 = vector.broadcast %cst_48 : f32 to vector<8x256xf32>
    %83 = arith.cmpf ogt, %81, %82 : vector<8x256xf32>
    %cst_49 = arith.constant 2.000000e-01 : f32
    %84 = vector.broadcast %cst_49 : f32 to vector<8x256xf32>
    %85 = arith.mulf %84, %81 : vector<8x256xf32>
    %86 = arith.select %83, %81, %85 : vector<8x256xi1>, vector<8x256xf32>
    %cst_50 = arith.constant dense<0.000000e+00> : vector<8xf32>
    %87 = vector.multi_reduction <add>, %86, %cst_50 [1] : vector<8x256xf32> to vector<8xf32>
    %88 = vector.shape_cast %87 : vector<8xf32> to vector<8x1xf32>
    %cst_51 = arith.constant 3.906250e-03 : f32
    %89 = vector.broadcast %cst_51 : f32 to vector<8x1xf32>
    %90 = arith.mulf %88, %89 : vector<8x1xf32>
    %91 = arith.mulf %86, %86 : vector<8x256xf32>
    %cst_52 = arith.constant dense<0.000000e+00> : vector<8xf32>
    %92 = vector.multi_reduction <add>, %91, %cst_52 [1] : vector<8x256xf32> to vector<8xf32>
    %93 = vector.shape_cast %92 : vector<8xf32> to vector<8x1xf32>
    %cst_53 = arith.constant 3.906250e-03 : f32
    %94 = vector.broadcast %cst_53 : f32 to vector<8x1xf32>
    %95 = arith.mulf %93, %94 : vector<8x1xf32>
    %96 = arith.mulf %90, %90 : vector<8x1xf32>
    %97 = arith.subf %95, %96 : vector<8x1xf32>
    %98 = vector.broadcast %90 : vector<8x1xf32> to vector<8x256xf32>
    %99 = arith.subf %86, %98 : vector<8x256xf32>
    %cst_54 = arith.constant 9.99999974E-6 : f32
    %100 = vector.broadcast %cst_54 : f32 to vector<8x1xf32>
    %101 = arith.addf %97, %100 : vector<8x1xf32>
    %102 = math.rsqrt %101 : vector<8x1xf32>
    %103 = vector.broadcast %102 : vector<8x1xf32> to vector<8x256xf32>
    %104 = arith.mulf %99, %103 : vector<8x256xf32>
    %c0_55 = arith.constant 0 : index
    %c0_56 = arith.constant 0 : index
    %c0_57 = arith.constant 0 : index
    %105 = vector.load %arg7[%c0_55, %c0_56, %c0_57] : memref<1x8x1xf32, #tpu.memory_space<vmem>>, vector<1x8x1xf32>
    %106 = vector.shape_cast %105 : vector<1x8x1xf32> to vector<8x1xf32>
    %107 = vector.broadcast %106 : vector<8x1xf32> to vector<8x256xf32>
    %108 = arith.mulf %107, %104 : vector<8x256xf32>
    %c0_58 = arith.constant 0 : index
    %c0_59 = arith.constant 0 : index
    %c0_60 = arith.constant 0 : index
    %109 = vector.load %arg8[%c0_58, %c0_59, %c0_60] : memref<1x8x1xf32, #tpu.memory_space<vmem>>, vector<1x8x1xf32>
    %110 = vector.shape_cast %109 : vector<1x8x1xf32> to vector<8x1xf32>
    %111 = vector.broadcast %110 : vector<8x1xf32> to vector<8x256xf32>
    %112 = arith.addf %108, %111 : vector<8x256xf32>
    %c0_61 = arith.constant 0 : index
    %c128_62 = arith.constant 128 : index
    %113 = vector.load %arg15[%c0_61, %c128_62] : memref<8x512xf32, #tpu.memory_space<vmem>>, vector<8x256xf32>
    tpu.vector_store %arg15[%c0_61, %c128_62], %112 {strides = array<i32>} : memref<8x512xf32, #tpu.memory_space<vmem>>, vector<8x256xf32>,
    %c0_63 = arith.constant 0 : index
    %c111_64 = arith.constant 111 : index
    %114 = vector.load %arg15[%c0_63, %c111_64] : memref<8x512xf32, #tpu.memory_space<vmem>>, vector<8x256xf32>
    %cst_65 = arith.constant 0.000000e+00 : f32
    %115 = vector.shape_cast %18 : vector<1x256xi1> to vector<1x256xi1>
    %116 = vector.broadcast %115 : vector<1x256xi1> to vector<8x256xi1>
    %117 = vector.broadcast %cst_65 : f32 to vector<8x256xf32>
    %118 = arith.select %116, %114, %117 : vector<8x256xi1>, vector<8x256xf32>
    %c0_66 = arith.constant 0 : index
    %c0_67 = arith.constant 0 : index
    %119 = vector.load %arg16[%c0_66, %c0_67] : memref<72x256xf32, #tpu.memory_space<vmem>>, vector<8x256xf32>
    tpu.vector_store %arg16[%c0_66, %c0_67], %118 {strides = array<i32>} : memref<72x256xf32, #tpu.memory_space<vmem>>, vector<8x256xf32>,
    %c0_68 = arith.constant 0 : index
    %c112_69 = arith.constant 112 : index
    %120 = vector.load %arg15[%c0_68, %c112_69] : memref<8x512xf32, #tpu.memory_space<vmem>>, vector<8x256xf32>
    %c8_70 = arith.constant 8 : index
    %c0_71 = arith.constant 0 : index
    %121 = vector.load %arg16[%c8_70, %c0_71] : memref<72x256xf32, #tpu.memory_space<vmem>>, vector<8x256xf32>
    tpu.vector_store %arg16[%c8_70, %c0_71], %120 {strides = array<i32>} : memref<72x256xf32, #tpu.memory_space<vmem>>, vector<8x256xf32>,
    %c0_72 = arith.constant 0 : index
    %c113_73 = arith.constant 113 : index
    %122 = vector.load %arg15[%c0_72, %c113_73] : memref<8x512xf32, #tpu.memory_space<vmem>>, vector<8x256xf32>
    %cst_74 = arith.constant 0.000000e+00 : f32
    %123 = vector.shape_cast %20 : vector<1x256xi1> to vector<1x256xi1>
    %124 = vector.broadcast %123 : vector<1x256xi1> to vector<8x256xi1>
    %125 = vector.broadcast %cst_74 : f32 to vector<8x256xf32>
    %126 = arith.select %124, %122, %125 : vector<8x256xi1>, vector<8x256xf32>
    %c16_75 = arith.constant 16 : index
    %c0_76 = arith.constant 0 : index
    %127 = vector.load %arg16[%c16_75, %c0_76] : memref<72x256xf32, #tpu.memory_space<vmem>>, vector<8x256xf32>
    tpu.vector_store %arg16[%c16_75, %c0_76], %126 {strides = array<i32>} : memref<72x256xf32, #tpu.memory_space<vmem>>, vector<8x256xf32>,
    %c0_77 = arith.constant 0 : index
    %c127_78 = arith.constant 127 : index
    %128 = vector.load %arg15[%c0_77, %c127_78] : memref<8x512xf32, #tpu.memory_space<vmem>>, vector<8x256xf32>
    %cst_79 = arith.constant 0.000000e+00 : f32
    %129 = vector.shape_cast %18 : vector<1x256xi1> to vector<1x256xi1>
    %130 = vector.broadcast %129 : vector<1x256xi1> to vector<8x256xi1>
    %131 = vector.broadcast %cst_79 : f32 to vector<8x256xf32>
    %132 = arith.select %130, %128, %131 : vector<8x256xi1>, vector<8x256xf32>
    %c24_80 = arith.constant 24 : index
    %c0_81 = arith.constant 0 : index
    %133 = vector.load %arg16[%c24_80, %c0_81] : memref<72x256xf32, #tpu.memory_space<vmem>>, vector<8x256xf32>
    tpu.vector_store %arg16[%c24_80, %c0_81], %132 {strides = array<i32>} : memref<72x256xf32, #tpu.memory_space<vmem>>, vector<8x256xf32>,
    %c0_82 = arith.constant 0 : index
    %c128_83 = arith.constant 128 : index
    %134 = vector.load %arg15[%c0_82, %c128_83] : memref<8x512xf32, #tpu.memory_space<vmem>>, vector<8x256xf32>
    %c32_84 = arith.constant 32 : index
    %c0_85 = arith.constant 0 : index
    %135 = vector.load %arg16[%c32_84, %c0_85] : memref<72x256xf32, #tpu.memory_space<vmem>>, vector<8x256xf32>
    tpu.vector_store %arg16[%c32_84, %c0_85], %134 {strides = array<i32>} : memref<72x256xf32, #tpu.memory_space<vmem>>, vector<8x256xf32>,
    %c0_86 = arith.constant 0 : index
    %c129_87 = arith.constant 129 : index
    %136 = vector.load %arg15[%c0_86, %c129_87] : memref<8x512xf32, #tpu.memory_space<vmem>>, vector<8x256xf32>
    %cst_88 = arith.constant 0.000000e+00 : f32
    %137 = vector.shape_cast %20 : vector<1x256xi1> to vector<1x256xi1>
    %138 = vector.broadcast %137 : vector<1x256xi1> to vector<8x256xi1>
    %139 = vector.broadcast %cst_88 : f32 to vector<8x256xf32>
    %140 = arith.select %138, %136, %139 : vector<8x256xi1>, vector<8x256xf32>
    %c40_89 = arith.constant 40 : index
    %c0_90 = arith.constant 0 : index
    %141 = vector.load %arg16[%c40_89, %c0_90] : memref<72x256xf32, #tpu.memory_space<vmem>>, vector<8x256xf32>
    tpu.vector_store %arg16[%c40_89, %c0_90], %140 {strides = array<i32>} : memref<72x256xf32, #tpu.memory_space<vmem>>, vector<8x256xf32>,
    %c0_91 = arith.constant 0 : index
    %c143_92 = arith.constant 143 : index
    %142 = vector.load %arg15[%c0_91, %c143_92] : memref<8x512xf32, #tpu.memory_space<vmem>>, vector<8x256xf32>
    %cst_93 = arith.constant 0.000000e+00 : f32
    %143 = vector.shape_cast %18 : vector<1x256xi1> to vector<1x256xi1>
    %144 = vector.broadcast %143 : vector<1x256xi1> to vector<8x256xi1>
    %145 = vector.broadcast %cst_93 : f32 to vector<8x256xf32>
    %146 = arith.select %144, %142, %145 : vector<8x256xi1>, vector<8x256xf32>
    %c48_94 = arith.constant 48 : index
    %c0_95 = arith.constant 0 : index
    %147 = vector.load %arg16[%c48_94, %c0_95] : memref<72x256xf32, #tpu.memory_space<vmem>>, vector<8x256xf32>
    tpu.vector_store %arg16[%c48_94, %c0_95], %146 {strides = array<i32>} : memref<72x256xf32, #tpu.memory_space<vmem>>, vector<8x256xf32>,
    %c0_96 = arith.constant 0 : index
    %c144_97 = arith.constant 144 : index
    %148 = vector.load %arg15[%c0_96, %c144_97] : memref<8x512xf32, #tpu.memory_space<vmem>>, vector<8x256xf32>
    %c56_98 = arith.constant 56 : index
    %c0_99 = arith.constant 0 : index
    %149 = vector.load %arg16[%c56_98, %c0_99] : memref<72x256xf32, #tpu.memory_space<vmem>>, vector<8x256xf32>
    tpu.vector_store %arg16[%c56_98, %c0_99], %148 {strides = array<i32>} : memref<72x256xf32, #tpu.memory_space<vmem>>, vector<8x256xf32>,
    %c0_100 = arith.constant 0 : index
    %c145_101 = arith.constant 145 : index
    %150 = vector.load %arg15[%c0_100, %c145_101] : memref<8x512xf32, #tpu.memory_space<vmem>>, vector<8x256xf32>
    %cst_102 = arith.constant 0.000000e+00 : f32
    %151 = vector.shape_cast %20 : vector<1x256xi1> to vector<1x256xi1>
    %152 = vector.broadcast %151 : vector<1x256xi1> to vector<8x256xi1>
    %153 = vector.broadcast %cst_102 : f32 to vector<8x256xf32>
    %154 = arith.select %152, %150, %153 : vector<8x256xi1>, vector<8x256xf32>
    %c64_103 = arith.constant 64 : index
    %c0_104 = arith.constant 0 : index
    %155 = vector.load %arg16[%c64_103, %c0_104] : memref<72x256xf32, #tpu.memory_space<vmem>>, vector<8x256xf32>
    tpu.vector_store %arg16[%c64_103, %c0_104], %154 {strides = array<i32>} : memref<72x256xf32, #tpu.memory_space<vmem>>, vector<8x256xf32>,
    %c0_105 = arith.constant 0 : index
    %c0_106 = arith.constant 0 : index
    %156 = vector.load %arg9[%c0_105, %c0_106] : memref<8x72xf32, #tpu.memory_space<vmem>>, vector<8x72xf32>
    %c0_107 = arith.constant 0 : index
    %c0_108 = arith.constant 0 : index
    %157 = vector.load %arg16[%c0_107, %c0_108] : memref<72x256xf32, #tpu.memory_space<vmem>>, vector<72x256xf32>
    %cst_109 = arith.constant dense<0.000000e+00> : vector<8x256xf32>
    %158 = tpu.matmul %156, %157, %cst_109 {dimension_numbers = #tpu.dot_dimension_numbers<[1], [0], [0], [1], [0, 0, 1, 1], [], []>} : vector<8x72xf32>, vector<72x256xf32>, vector<8x256xf32> -> vector<8x256xf32>
    %c0_110 = arith.constant 0 : index
    %c0_111 = arith.constant 0 : index
    %159 = vector.load %arg10[%c0_110, %c0_111] : memref<8x1xf32, #tpu.memory_space<vmem>>, vector<8x1xf32>
    %160 = vector.broadcast %159 : vector<8x1xf32> to vector<8x256xf32>
    %161 = arith.addf %158, %160 : vector<8x256xf32>
    %c0_112 = arith.constant 0 : index
    %c0_113 = arith.constant 0 : index
    %162 = vector.load %arg11[%c0_112, %c0_113] : memref<8x1xf32, #tpu.memory_space<vmem>>, vector<8x1xf32>
    %c0_114 = arith.constant 0 : index
    %c0_115 = arith.constant 0 : index
    %c0_116 = arith.constant 0 : index
    %163 = vector.load %arg3[%c0_114, %c0_115, %c0_116] : memref<1x1x256xf32, #tpu.memory_space<vmem>>, vector<1x1x256xf32>
    %164 = vector.shape_cast %163 : vector<1x1x256xf32> to vector<1x256xf32>
    %165 = vector.broadcast %162 : vector<8x1xf32> to vector<8x256xf32>
    %166 = vector.broadcast %164 : vector<1x256xf32> to vector<8x256xf32>
    %167 = arith.mulf %165, %166 : vector<8x256xf32>
    %168 = arith.addf %161, %167 : vector<8x256xf32>
    %cst_117 = arith.constant 0.000000e+00 : f32
    %169 = vector.broadcast %cst_117 : f32 to vector<8x256xf32>
    %170 = arith.cmpf ogt, %168, %169 : vector<8x256xf32>
    %cst_118 = arith.constant 2.000000e-01 : f32
    %171 = vector.broadcast %cst_118 : f32 to vector<8x256xf32>
    %172 = arith.mulf %171, %168 : vector<8x256xf32>
    %173 = arith.select %170, %168, %172 : vector<8x256xi1>, vector<8x256xf32>
    %cst_119 = arith.constant dense<0.000000e+00> : vector<8xf32>
    %174 = vector.multi_reduction <add>, %173, %cst_119 [1] : vector<8x256xf32> to vector<8xf32>
    %175 = vector.shape_cast %174 : vector<8xf32> to vector<8x1xf32>
    %cst_120 = arith.constant 3.906250e-03 : f32
    %176 = vector.broadcast %cst_120 : f32 to vector<8x1xf32>
    %177 = arith.mulf %175, %176 : vector<8x1xf32>
    %178 = arith.mulf %173, %173 : vector<8x256xf32>
    %cst_121 = arith.constant dense<0.000000e+00> : vector<8xf32>
    %179 = vector.multi_reduction <add>, %178, %cst_121 [1] : vector<8x256xf32> to vector<8xf32>
    %180 = vector.shape_cast %179 : vector<8xf32> to vector<8x1xf32>
    %cst_122 = arith.constant 3.906250e-03 : f32
    %181 = vector.broadcast %cst_122 : f32 to vector<8x1xf32>
    %182 = arith.mulf %180, %181 : vector<8x1xf32>
    %183 = arith.mulf %177, %177 : vector<8x1xf32>
    %184 = arith.subf %182, %183 : vector<8x1xf32>
    %185 = vector.broadcast %177 : vector<8x1xf32> to vector<8x256xf32>
    %186 = arith.subf %173, %185 : vector<8x256xf32>
    %cst_123 = arith.constant 9.99999974E-6 : f32
    %187 = vector.broadcast %cst_123 : f32 to vector<8x1xf32>
    %188 = arith.addf %184, %187 : vector<8x1xf32>
    %189 = math.rsqrt %188 : vector<8x1xf32>
    %190 = vector.broadcast %189 : vector<8x1xf32> to vector<8x256xf32>
    %191 = arith.mulf %186, %190 : vector<8x256xf32>
    %c0_124 = arith.constant 0 : index
    %c0_125 = arith.constant 0 : index
    %c0_126 = arith.constant 0 : index
    %192 = vector.load %arg12[%c0_124, %c0_125, %c0_126] : memref<1x8x1xf32, #tpu.memory_space<vmem>>, vector<1x8x1xf32>
    %193 = vector.shape_cast %192 : vector<1x8x1xf32> to vector<8x1xf32>
    %194 = vector.broadcast %193 : vector<8x1xf32> to vector<8x256xf32>
    %195 = arith.mulf %194, %191 : vector<8x256xf32>
    %c0_127 = arith.constant 0 : index
    %c0_128 = arith.constant 0 : index
    %c0_129 = arith.constant 0 : index
    %196 = vector.load %arg13[%c0_127, %c0_128, %c0_129] : memref<1x8x1xf32, #tpu.memory_space<vmem>>, vector<1x8x1xf32>
    %197 = vector.shape_cast %196 : vector<1x8x1xf32> to vector<8x1xf32>
    %198 = vector.broadcast %197 : vector<8x1xf32> to vector<8x256xf32>
    %199 = arith.addf %195, %198 : vector<8x256xf32>
    %c0_130 = arith.constant 0 : index
    %c0_131 = arith.constant 0 : index
    %c0_132 = arith.constant 0 : index
    %200 = vector.load %arg14[%c0_130, %c0_131, %c0_132] : memref<1x8x256xf32, #tpu.memory_space<vmem>>, vector<1x8x256xf32>
    %201 = vector.shape_cast %200 : vector<1x8x256xf32> to vector<8x256xf32>
    %202 = vector.shape_cast %199 : vector<8x256xf32> to vector<1x8x256xf32>
    tpu.vector_store %arg14[%c0_130, %c0_131, %c0_132], %202 {strides = array<i32>} : memref<1x8x256xf32, #tpu.memory_space<vmem>>, vector<1x8x256xf32>,
    return
  }
  func.func @transform_0(%arg0: i32) -> (i32, i32, i32) {
    %c0_i32 = arith.constant 0 : i32
    %c0_i32_0 = arith.constant 0 : i32
    %c0_i32_1 = arith.constant 0 : i32
    return %arg0, %c0_i32, %c0_i32_0 : i32, i32, i32
  }
  func.func @transform_1(%arg0: i32) -> (i32, i32, i32) {
    %c0_i32 = arith.constant 0 : i32
    %c0_i32_0 = arith.constant 0 : i32
    %c0_i32_1 = arith.constant 0 : i32
    return %arg0, %c0_i32, %c0_i32_0 : i32, i32, i32
  }
  func.func @transform_2(%arg0: i32) -> (i32, i32, i32) {
    %c0_i32 = arith.constant 0 : i32
    %c0_i32_0 = arith.constant 0 : i32
    %c0_i32_1 = arith.constant 0 : i32
    return %arg0, %c0_i32, %c0_i32_0 : i32, i32, i32
  }
  func.func @transform_3(%arg0: i32) -> (i32, i32) {
    %c0_i32 = arith.constant 0 : i32
    %c0_i32_0 = arith.constant 0 : i32
    %c0_i32_1 = arith.constant 0 : i32
    return %c0_i32, %c0_i32_0 : i32, i32
  }
  func.func @transform_4(%arg0: i32) -> (i32, i32) {
    %c0_i32 = arith.constant 0 : i32
    %c0_i32_0 = arith.constant 0 : i32
    %c0_i32_1 = arith.constant 0 : i32
    return %c0_i32, %c0_i32_0 : i32, i32
  }
  func.func @transform_5(%arg0: i32) -> (i32, i32) {
    %c0_i32 = arith.constant 0 : i32
    %c0_i32_0 = arith.constant 0 : i32
    %c0_i32_1 = arith.constant 0 : i32
    return %c0_i32, %c0_i32_0 : i32, i32
  }
  func.func @transform_6(%arg0: i32) -> (i32, i32, i32) {
    %c0_i32 = arith.constant 0 : i32
    %c0_i32_0 = arith.constant 0 : i32
    %c0_i32_1 = arith.constant 0 : i32
    return %arg0, %c0_i32, %c0_i32_0 : i32, i32, i32
  }
  func.func @transform_7(%arg0: i32) -> (i32, i32, i32) {
    %c0_i32 = arith.constant 0 : i32
    %c0_i32_0 = arith.constant 0 : i32
    %c0_i32_1 = arith.constant 0 : i32
    return %arg0, %c0_i32, %c0_i32_0 : i32, i32, i32
  }
  func.func @transform_8(%arg0: i32) -> (i32, i32) {
    %c0_i32 = arith.constant 0 : i32
    %c0_i32_0 = arith.constant 0 : i32
    %c0_i32_1 = arith.constant 0 : i32
    return %c0_i32, %c0_i32_0 : i32, i32
  }
  func.func @transform_9(%arg0: i32) -> (i32, i32) {
    %c0_i32 = arith.constant 0 : i32
    %c0_i32_0 = arith.constant 0 : i32
    %c0_i32_1 = arith.constant 0 : i32
    return %c0_i32, %c0_i32_0 : i32, i32
  }
  func.func @transform_10(%arg0: i32) -> (i32, i32) {
    %c0_i32 = arith.constant 0 : i32
    %c0_i32_0 = arith.constant 0 : i32
    %c0_i32_1 = arith.constant 0 : i32
    return %c0_i32, %c0_i32_0 : i32, i32
  }
  func.func @transform_11(%arg0: i32) -> (i32, i32, i32) {
    %c0_i32 = arith.constant 0 : i32
    %c0_i32_0 = arith.constant 0 : i32
    %c0_i32_1 = arith.constant 0 : i32
    return %arg0, %c0_i32, %c0_i32_0 : i32, i32, i32
  }
  func.func @transform_12(%arg0: i32) -> (i32, i32, i32) {
    %c0_i32 = arith.constant 0 : i32
    %c0_i32_0 = arith.constant 0 : i32
    %c0_i32_1 = arith.constant 0 : i32
    return %arg0, %c0_i32, %c0_i32_0 : i32, i32, i32
  }
  func.func @transform_13(%arg0: i32) -> (i32, i32, i32) {
    %c0_i32 = arith.constant 0 : i32
    %c0_i32_0 = arith.constant 0 : i32
    %c0_i32_1 = arith.constant 0 : i32
    return %arg0, %c0_i32, %c0_i32_0 : i32, i32, i32
  }
}

</mosaic_0001>

<llo_original>
// kernel: genblock_forward.1
$region0: #{genblock_forward.1}
  #allocation0 [shape = 'u32[]', space=smem, size = 0x4, offset = 0x4, fixed_abs, tag = 'smem constant byte address 0x4 - core index']
  #allocation1 [shape = 'u32[144,128]{1,0:T(1,128)}', space=vmem, size = 0x12000, scoped, tag = 'internal scratch']
  #allocation2 [shape = 'f32[8,512]{1,0:T(8,128)}', space=vmem, size = 0x4000, scoped, tag = 'scratch operand']
  #allocation3 [shape = 'f32[72,256]{1,0:T(8,128)}', space=vmem, size = 0x12000, scoped, tag = 'scratch operand']
  %s0 = inlined_call_operand.vmem [shape: f32[2,8,256], index: 0, kind: input, shape index: {}]
  %s1 = inlined_call_operand.vmem [shape: f32[2,1,256], index: 1, kind: input, shape index: {}]
  %s2 = inlined_call_operand.vmem [shape: f32[2,1,256], index: 2, kind: input, shape index: {}]
  %s3 = inlined_call_operand.vmem [shape: f32[8,72], index: 3, kind: input, shape index: {}]
  %s4 = inlined_call_operand.vmem [shape: f32[8,1], index: 4, kind: input, shape index: {}]
  %s5 = inlined_call_operand.vmem [shape: f32[8,1], index: 5, kind: input, shape index: {}]
  %s6 = inlined_call_operand.vmem [shape: f32[2,8,1], index: 6, kind: input, shape index: {}]
  %s7 = inlined_call_operand.vmem [shape: f32[2,8,1], index: 7, kind: input, shape index: {}]
  %s8 = inlined_call_operand.vmem [shape: f32[8,72], index: 8, kind: input, shape index: {}]
  %s9 = inlined_call_operand.vmem [shape: f32[8,1], index: 9, kind: input, shape index: {}]
  %s10 = inlined_call_operand.vmem [shape: f32[8,1], index: 10, kind: input, shape index: {}]
  %s11 = inlined_call_operand.vmem [shape: f32[2,8,1], index: 11, kind: input, shape index: {}]
  %s12 = inlined_call_operand.vmem [shape: f32[2,8,1], index: 12, kind: input, shape index: {}]
  %s13 = inlined_call_operand.vmem [shape: f32[2,8,256], index: 13, kind: output, shape index: {}]
  %s14 = sld [smem:[#allocation0]]
  $region85: #{genblock_forward.1} parent=0
    _
  %s16 = ssub.s32 1, %s14
  %s17 = scalar_select 0, %s16, %s14
  loop: start=0, step=1, limit=4
  $region2: #{genblock_forward.1} parent=0 // loop_pre_header
    _
  $region3: #{genblock_forward.1} parent=0 // loop_header
    %s19 = sphi 0, %s23
    %p20 = scmp.ge.s32.totalorder %s19, 4
    %s29 = sphi 0, %s31
    %s32 = sphi 0, %s29
    %s33 = sphi 0, %s32
    %s49 = sphi 0, %s33
    %s55 = sphi 0, %s57
    %s58 = sphi 0, %s55
    %s59 = sphi 0, %s58
    %s75 = sphi 0, %s59
    %s81 = sphi 0, %s83
    %s84 = sphi 0, %s81
    %s85 = sphi 0, %s84
    %s101 = sphi 0, %s85
    %s105 = sphi 0, %s105
    %s107 = sphi 0, %s105
    %s108 = sphi 0, %s107
    %s122 = sphi 0, %s108
    %s126 = sphi 0, %s126
    %s128 = sphi 0, %s126
    %s129 = sphi 0, %s128
    %s143 = sphi 0, %s129
    %s147 = sphi 0, %s147
    %s149 = sphi 0, %s147
    %s150 = sphi 0, %s149
    %s164 = sphi 0, %s150
    %s170 = sphi 0, %s172
    %s173 = sphi 0, %s170
    %s174 = sphi 0, %s173
    %s190 = sphi 0, %s174
    %s196 = sphi 0, %s198
    %s199 = sphi 0, %s196
    %s200 = sphi 0, %s199
    %s216 = sphi 0, %s200
    %s220 = sphi 0, %s220
    %s222 = sphi 0, %s220
    %s223 = sphi 0, %s222
    %s237 = sphi 0, %s223
    %s241 = sphi 0, %s241
    %s243 = sphi 0, %s241
    %s244 = sphi 0, %s243
    %s258 = sphi 0, %s244
    %s262 = sphi 0, %s262
    %s264 = sphi 0, %s262
    %s265 = sphi 0, %s264
    %s279 = sphi 0, %s265
    %s285 = sphi 0, %s287
    %s288 = sphi 0, %s285
    %s289 = sphi 0, %s288
    %s305 = sphi 0, %s289
    %s311 = sphi 0, %s313
    %s314 = sphi 0, %s311
    %s315 = sphi 0, %s314
    %s331 = sphi 0, %s315
    %s337 = sphi 0, %s339
    %s340 = sphi 0, %s337
    %s341 = sphi 0, %s340
    %s357 = sphi 0, %s341
  $region4: #{genblock_forward.1} parent=0 // loop_header_branch
    %22 = sbr.rel (%p20) target = $region8
  $region5: #{genblock_forward.1} parent=0 // loop_body
    %s24 = ssub.s32 %s19, 1
    %s25 = ssub.s32 %s19, 2
    %s26 = sadd.s32 %s19, 1
    %s27 = ssub.s32 %s19, %s26
    %p28 = scmp.eq.s32.totalorder %s27, 0
    %s30 = sadd.s32 %s29, 1
    %s31 = scalar_select %p28, %s29, %s30
    %p34 = pneg %p28
    %p35 = scmp.eq.s32.totalorder %s19, 1
    %p36 = por %p34, %p35
    %p37 = scmp.ne.s32.totalorder %s29, %s32
    %p38 = scmp.eq.s32.totalorder %s19, 0
    %p39 = por %p37, %p38
    %p40 = scmp.ne.s32.totalorder %s29, %s32
    %p41 = scmp.eq.s32.totalorder %s24, 1
    %p42 = por %p40, %p41
    %p43 = scmp.ne.s32.totalorder %s32, %s33
    %p44 = scmp.eq.s32.totalorder %s24, 0
    %p45 = por %p43, %p44
    %p46 = scmp.ne.s32.totalorder %s32, %s33
    %p47 = scmp.eq.s32.totalorder %s25, 1
    %p48 = por %p46, %p47
    %p50 = scmp.ne.s32.totalorder %s33, %s49
    %p51 = scmp.eq.s32.totalorder %s25, 0
    %p52 = por %p50, %p51
    %s53 = ssub.s32 %s19, %s26
    %p54 = scmp.eq.s32.totalorder %s53, 0
    %s56 = sadd.s32 %s55, 1
    %s57 = scalar_select %p54, %s55, %s56
    %p60 = pneg %p54
    %p61 = scmp.eq.s32.totalorder %s19, 1
    %p62 = por %p60, %p61
    %p63 = scmp.ne.s32.totalorder %s55, %s58
    %p64 = scmp.eq.s32.totalorder %s19, 0
    %p65 = por %p63, %p64
    %p66 = scmp.ne.s32.totalorder %s55, %s58
    %p67 = scmp.eq.s32.totalorder %s24, 1
    %p68 = por %p66, %p67
    %p69 = scmp.ne.s32.totalorder %s58, %s59
    %p70 = scmp.eq.s32.totalorder %s24, 0
    %p71 = por %p69, %p70
    %p72 = scmp.ne.s32.totalorder %s58, %s59
    %p73 = scmp.eq.s32.totalorder %s25, 1
    %p74 = por %p72, %p73
    %p76 = scmp.ne.s32.totalorder %s59, %s75
    %p77 = scmp.eq.s32.totalorder %s25, 0
    %p78 = por %p76, %p77
    %s79 = ssub.s32 %s19, %s26
    %p80 = scmp.eq.s32.totalorder %s79, 0
    %s82 = sadd.s32 %s81, 1
    %s83 = scalar_select %p80, %s81, %s82
    %p86 = pneg %p80
    %p87 = scmp.eq.s32.totalorder %s19, 1
    %p88 = por %p86, %p87
    %p89 = scmp.ne.s32.totalorder %s81, %s84
    %p90 = scmp.eq.s32.totalorder %s19, 0
    %p91 = por %p89, %p90
    %p92 = scmp.ne.s32.totalorder %s81, %s84
    %p93 = scmp.eq.s32.totalorder %s24, 1
    %p94 = por %p92, %p93
    %p95 = scmp.ne.s32.totalorder %s84, %s85
    %p96 = scmp.eq.s32.totalorder %s24, 0
    %p97 = por %p95, %p96
    %p98 = scmp.ne.s32.totalorder %s84, %s85
    %p99 = scmp.eq.s32.totalorder %s25, 1
    %p100 = por %p98, %p99
    %p102 = scmp.ne.s32.totalorder %s85, %s101
    %p103 = scmp.eq.s32.totalorder %s25, 0
    %p104 = por %p102, %p103
    %s106 = sadd.s32 %s105, 1
    %p109 = scmp.eq.s32.totalorder %s19, 1
    %p110 = scmp.ne.s32.totalorder %s105, %s107
    %p111 = scmp.eq.s32.totalorder %s19, 0
    %p112 = por %p110, %p111
    %p113 = scmp.ne.s32.totalorder %s105, %s107
    %p114 = scmp.eq.s32.totalorder %s24, 1
    %p115 = por %p113, %p114
    %p116 = scmp.ne.s32.totalorder %s107, %s108
    %p117 = scmp.eq.s32.totalorder %s24, 0
    %p118 = por %p116, %p117
    %p119 = scmp.ne.s32.totalorder %s107, %s108
    %p120 = scmp.eq.s32.totalorder %s25, 1
    %p121 = por %p119, %p120
    %p123 = scmp.ne.s32.totalorder %s108, %s122
    %p124 = scmp.eq.s32.totalorder %s25, 0
    %p125 = por %p123, %p124
    %s127 = sadd.s32 %s126, 1
    %p130 = scmp.eq.s32.totalorder %s19, 1
    %p131 = scmp.ne.s32.totalorder %s126, %s128
    %p132 = scmp.eq.s32.totalorder %s19, 0
    %p133 = por %p131, %p132
    %p134 = scmp.ne.s32.totalorder %s126, %s128
    %p135 = scmp.eq.s32.totalorder %s24, 1
    %p136 = por %p134, %p135
    %p137 = scmp.ne.s32.totalorder %s128, %s129
    %p138 = scmp.eq.s32.totalorder %s24, 0
    %p139 = por %p137, %p138
    %p140 = scmp.ne.s32.totalorder %s128, %s129
    %p141 = scmp.eq.s32.totalorder %s25, 1
    %p142 = por %p140, %p141
    %p144 = scmp.ne.s32.totalorder %s129, %s143
    %p145 = scmp.eq.s32.totalorder %s25, 0
    %p146 = por %p144, %p145
    %s148 = sadd.s32 %s147, 1
    %p151 = scmp.eq.s32.totalorder %s19, 1
    %p152 = scmp.ne.s32.totalorder %s147, %s149
    %p153 = scmp.eq.s32.totalorder %s19, 0
    %p154 = por %p152, %p153
    %p155 = scmp.ne.s32.totalorder %s147, %s149
    %p156 = scmp.eq.s32.totalorder %s24, 1
    %p157 = por %p155, %p156
    %p158 = scmp.ne.s32.totalorder %s149, %s150
    %p159 = scmp.eq.s32.totalorder %s24, 0
    %p160 = por %p158, %p159
    %p161 = scmp.ne.s32.totalorder %s149, %s150
    %p162 = scmp.eq.s32.totalorder %s25, 1
    %p163 = por %p161, %p162
    %p165 = scmp.ne.s32.totalorder %s150, %s164
    %p166 = scmp.eq.s32.totalorder %s25, 0
    %p167 = por %p165, %p166
    %s168 = ssub.s32 %s19, %s26
    %p169 = scmp.eq.s32.totalorder %s168, 0
    %s171 = sadd.s32 %s170, 1
    %s172 = scalar_select %p169, %s170, %s171
    %p175 = pneg %p169
    %p176 = scmp.eq.s32.totalorder %s19, 1
    %p177 = por %p175, %p176
    %p178 = scmp.ne.s32.totalorder %s170, %s173
    %p179 = scmp.eq.s32.totalorder %s19, 0
    %p180 = por %p178, %p179
    %p181 = scmp.ne.s32.totalorder %s170, %s173
    %p182 = scmp.eq.s32.totalorder %s24, 1
    %p183 = por %p181, %p182
    %p184 = scmp.ne.s32.totalorder %s173, %s174
    %p185 = scmp.eq.s32.totalorder %s24, 0
    %p186 = por %p184, %p185
    %p187 = scmp.ne.s32.totalorder %s173, %s174
    %p188 = scmp.eq.s32.totalorder %s25, 1
    %p189 = por %p187, %p188
    %p191 = scmp.ne.s32.totalorder %s174, %s190
    %p192 = scmp.eq.s32.totalorder %s25, 0
    %p193 = por %p191, %p192
    %s194 = ssub.s32 %s19, %s26
    %p195 = scmp.eq.s32.totalorder %s194, 0
    %s197 = sadd.s32 %s196, 1
    %s198 = scalar_select %p195, %s196, %s197
    %p201 = pneg %p195
    %p202 = scmp.eq.s32.totalorder %s19, 1
    %p203 = por %p201, %p202
    %p204 = scmp.ne.s32.totalorder %s196, %s199
    %p205 = scmp.eq.s32.totalorder %s19, 0
    %p206 = por %p204, %p205
    %p207 = scmp.ne.s32.totalorder %s196, %s199
    %p208 = scmp.eq.s32.totalorder %s24, 1
    %p209 = por %p207, %p208
    %p210 = scmp.ne.s32.totalorder %s199, %s200
    %p211 = scmp.eq.s32.totalorder %s24, 0
    %p212 = por %p210, %p211
    %p213 = scmp.ne.s32.totalorder %s199, %s200
    %p214 = scmp.eq.s32.totalorder %s25, 1
    %p215 = por %p213, %p214
    %p217 = scmp.ne.s32.totalorder %s200, %s216
    %p218 = scmp.eq.s32.totalorder %s25, 0
    %p219 = por %p217, %p218
    %s221 = sadd.s32 %s220, 1
    %p224 = scmp.eq.s32.totalorder %s19, 1
    %p225 = scmp.ne.s32.totalorder %s220, %s222
    %p226 = scmp.eq.s32.totalorder %s19, 0
    %p227 = por %p225, %p226
    %p228 = scmp.ne.s32.totalorder %s220, %s222
    %p229 = scmp.eq.s32.totalorder %s24, 1
    %p230 = por %p228, %p229
    %p231 = scmp.ne.s32.totalorder %s222, %s223
    %p232 = scmp.eq.s32.totalorder %s24, 0
    %p233 = por %p231, %p232
    %p234 = scmp.ne.s32.totalorder %s222, %s223
    %p235 = scmp.eq.s32.totalorder %s25, 1
    %p236 = por %p234, %p235
    %p238 = scmp.ne.s32.totalorder %s223, %s237
    %p239 = scmp.eq.s32.totalorder %s25, 0
    %p240 = por %p238, %p239
    %s242 = sadd.s32 %s241, 1
    %p245 = scmp.eq.s32.totalorder %s19, 1
    %p246 = scmp.ne.s32.totalorder %s241, %s243
    %p247 = scmp.eq.s32.totalorder %s19, 0
    %p248 = por %p246, %p247
    %p249 = scmp.ne.s32.totalorder %s241, %s243
    %p250 = scmp.eq.s32.totalorder %s24, 1
    %p251 = por %p249, %p250
    %p252 = scmp.ne.s32.totalorder %s243, %s244
    %p253 = scmp.eq.s32.totalorder %s24, 0
    %p254 = por %p252, %p253
    %p255 = scmp.ne.s32.totalorder %s243, %s244
    %p256 = scmp.eq.s32.totalorder %s25, 1
    %p257 = por %p255, %p256
    %p259 = scmp.ne.s32.totalorder %s244, %s258
    %p260 = scmp.eq.s32.totalorder %s25, 0
    %p261 = por %p259, %p260
    %s263 = sadd.s32 %s262, 1
    %p266 = scmp.eq.s32.totalorder %s19, 1
    %p267 = scmp.ne.s32.totalorder %s262, %s264
    %p268 = scmp.eq.s32.totalorder %s19, 0
    %p269 = por %p267, %p268
    %p270 = scmp.ne.s32.totalorder %s262, %s264
    %p271 = scmp.eq.s32.totalorder %s24, 1
    %p272 = por %p270, %p271
    %p273 = scmp.ne.s32.totalorder %s264, %s265
    %p274 = scmp.eq.s32.totalorder %s24, 0
    %p275 = por %p273, %p274
    %p276 = scmp.ne.s32.totalorder %s264, %s265
    %p277 = scmp.eq.s32.totalorder %s25, 1
    %p278 = por %p276, %p277
    %p280 = scmp.ne.s32.totalorder %s265, %s279
    %p281 = scmp.eq.s32.totalorder %s25, 0
    %p282 = por %p280, %p281
    %s283 = ssub.s32 %s19, %s26
    %p284 = scmp.eq.s32.totalorder %s283, 0
    %s286 = sadd.s32 %s285, 1
    %s287 = scalar_select %p284, %s285, %s286
    %p290 = pneg %p284
    %p291 = scmp.eq.s32.totalorder %s19, 1
    %p292 = por %p290, %p291
    %p293 = scmp.ne.s32.totalorder %s285, %s288
    %p294 = scmp.eq.s32.totalorder %s19, 0
    %p295 = por %p293, %p294
    %p296 = scmp.ne.s32.totalorder %s285, %s288
    %p297 = scmp.eq.s32.totalorder %s24, 1
    %p298 = por %p296, %p297
    %p299 = scmp.ne.s32.totalorder %s288, %s289
    %p300 = scmp.eq.s32.totalorder %s24, 0
    %p301 = por %p299, %p300
    %p302 = scmp.ne.s32.totalorder %s288, %s289
    %p303 = scmp.eq.s32.totalorder %s25, 1
    %p304 = por %p302, %p303
    %p306 = scmp.ne.s32.totalorder %s289, %s305
    %p307 = scmp.eq.s32.totalorder %s25, 0
    %p308 = por %p306, %p307
    %s309 = ssub.s32 %s19, %s26
    %p310 = scmp.eq.s32.totalorder %s309, 0
    %s312 = sadd.s32 %s311, 1
    %s313 = scalar_select %p310, %s311, %s312
    %p316 = pneg %p310
    %p317 = scmp.eq.s32.totalorder %s19, 1
    %p318 = por %p316, %p317
    %p319 = scmp.ne.s32.totalorder %s311, %s314
    %p320 = scmp.eq.s32.totalorder %s19, 0
    %p321 = por %p319, %p320
    %p322 = scmp.ne.s32.totalorder %s311, %s314
    %p323 = scmp.eq.s32.totalorder %s24, 1
    %p324 = por %p322, %p323
    %p325 = scmp.ne.s32.totalorder %s314, %s315
    %p326 = scmp.eq.s32.totalorder %s24, 0
    %p327 = por %p325, %p326
    %p328 = scmp.ne.s32.totalorder %s314, %s315
    %p329 = scmp.eq.s32.totalorder %s25, 1
    %p330 = por %p328, %p329
    %p332 = scmp.ne.s32.totalorder %s315, %s331
    %p333 = scmp.eq.s32.totalorder %s25, 0
    %p334 = por %p332, %p333
    %s335 = ssub.s32 %s19, %s26
    %p336 = scmp.eq.s32.totalorder %s335, 0
    %s338 = sadd.s32 %s337, 1
    %s339 = scalar_select %p336, %s337, %s338
    %p342 = pneg %p336
    %p343 = scmp.eq.s32.totalorder %s19, 1
    %p344 = por %p342, %p343
    %p345 = scmp.ne.s32.totalorder %s337, %s340
    %p346 = scmp.eq.s32.totalorder %s19, 0
    %p347 = por %p345, %p346
    %p348 = scmp.ne.s32.totalorder %s337, %s340
    %p349 = scmp.eq.s32.totalorder %s24, 1
    %p350 = por %p348, %p349
    %p351 = scmp.ne.s32.totalorder %s340, %s341
    %p352 = scmp.eq.s32.totalorder %s24, 0
    %p353 = por %p351, %p352
    %p354 = scmp.ne.s32.totalorder %s340, %s341
    %p355 = scmp.eq.s32.totalorder %s25, 1
    %p356 = por %p354, %p355
    %p358 = scmp.ne.s32.totalorder %s341, %s357
    %p359 = scmp.eq.s32.totalorder %s25, 0
    %p360 = por %p358, %p359
    %p361 = scmp.le.s32.totalorder 1, %s19
    %p362 = scmp.lt.s32.totalorder %s19, 3
    %p363 = pnand %p361, %p362
    %p364 = pneg %p363
    // Predicated region
    $region9: #{genblock_forward.1} parent=5 // pred_check
      _
    $region10: #{genblock_forward.1} parent=5 // pred_check_branch
      %366 = sbr.rel (%p363) target = $region12
    $region11: #{genblock_forward.1} parent=5 // pred_region
      %s367 = ssub.s32 %s19, 1
      // Predicated region
      $region13: #{genblock_forward.1} parent=11 // pred_check
        %p368 = pneg %p118
      $region14: #{genblock_forward.1} parent=11 // pred_check_branch
        %370 = sbr.rel (%p368) target = $region16
      $region15: #{genblock_forward.1} parent=11 // pred_region
        _
      $region16: #{genblock_forward.1} parent=11 // pred_fallthru
        _
      // Predicated region
      $region17: #{genblock_forward.1} parent=11 // pred_check
        %p371 = pneg %p139
      $region18: #{genblock_forward.1} parent=11 // pred_check_branch
        %373 = sbr.rel (%p371) target = $region20
      $region19: #{genblock_forward.1} parent=11 // pred_region
        _
      $region20: #{genblock_forward.1} parent=11 // pred_fallthru
        _
      // Predicated region
      $region21: #{genblock_forward.1} parent=11 // pred_check
        %p374 = pneg %p160
      $region22: #{genblock_forward.1} parent=11 // pred_check_branch
        %376 = sbr.rel (%p374) target = $region24
      $region23: #{genblock_forward.1} parent=11 // pred_region
        _
      $region24: #{genblock_forward.1} parent=11 // pred_fallthru
        _
      // Predicated region
      $region25: #{genblock_forward.1} parent=11 // pred_check
        %p377 = pneg %p233
      $region26: #{genblock_forward.1} parent=11 // pred_check_branch
        %379 = sbr.rel (%p377) target = $region28
      $region27: #{genblock_forward.1} parent=11 // pred_region
        _
      $region28: #{genblock_forward.1} parent=11 // pred_fallthru
        _
      // Predicated region
      $region29: #{genblock_forward.1} parent=11 // pred_check
        %p380 = pneg %p254
      $region30: #{genblock_forward.1} parent=11 // pred_check_branch
        %382 = sbr.rel (%p380) target = $region32
      $region31: #{genblock_forward.1} parent=11 // pred_region
        _
      $region32: #{genblock_forward.1} parent=11 // pred_fallthru
        _
      // Predicated region
      $region33: #{genblock_forward.1} parent=11 // pred_check
        %p383 = pneg %p275
      $region34: #{genblock_forward.1} parent=11 // pred_check_branch
        %385 = sbr.rel (%p383) target = $region36
      $region35: #{genblock_forward.1} parent=11 // pred_region
        _
      $region36: #{genblock_forward.1} parent=11 // pred_fallthru
        _
    $region12: #{genblock_forward.1} parent=5 // pred_fallthru
      _
    %p386 = scmp.lt.s32.totalorder %s19, 2
    // Predicated region
    $region37: #{genblock_forward.1} parent=5 // pred_check
      %p387 = pneg %p386
    $region38: #{genblock_forward.1} parent=5 // pred_check_branch
      %389 = sbr.rel (%p387) target = $region40
    $region39: #{genblock_forward.1} parent=5 // pred_region
      // Predicated region
      $region41: #{genblock_forward.1} parent=39 // pred_check
        %p390 = pneg %p39
      $region42: #{genblock_forward.1} parent=39 // pred_check_branch
        %392 = sbr.rel (%p390) target = $region44
      $region43: #{genblock_forward.1} parent=39 // pred_region
        %p393 = scmp.lt.s32.totalorder %s19, 1
        %s394 = scalar_select %p393, %s19, 1
        %s395 = smul.addr %s394, 2
        %s396 = smul.addr %s395, 8
        %s397 = scalar_lea.vmem %s0, %s396
      $region44: #{genblock_forward.1} parent=39 // pred_fallthru
        _
      // Predicated region
      $region45: #{genblock_forward.1} parent=39 // pred_check
        %p398 = pneg %p65
      $region46: #{genblock_forward.1} parent=39 // pred_check_branch
        %400 = sbr.rel (%p398) target = $region48
      $region47: #{genblock_forward.1} parent=39 // pred_region
        %p401 = scmp.lt.s32.totalorder %s19, 1
        %s402 = scalar_select %p401, %s19, 1
        %s403 = smul.addr %s402, 2
        %s404 = scalar_lea.vmem %s1, %s403
      $region48: #{genblock_forward.1} parent=39 // pred_fallthru
        _
      // Predicated region
      $region49: #{genblock_forward.1} parent=39 // pred_check
        %p405 = pneg %p91
      $region50: #{genblock_forward.1} parent=39 // pred_check_branch
        %407 = sbr.rel (%p405) target = $region52
      $region51: #{genblock_forward.1} parent=39 // pred_region
        %p408 = scmp.lt.s32.totalorder %s19, 1
        %s409 = scalar_select %p408, %s19, 1
        %s410 = smul.addr %s409, 2
        %s411 = scalar_lea.vmem %s2, %s410
      $region52: #{genblock_forward.1} parent=39 // pred_fallthru
        _
      // Predicated region
      $region53: #{genblock_forward.1} parent=39 // pred_check
        %p412 = pneg %p180
      $region54: #{genblock_forward.1} parent=39 // pred_check_branch
        %414 = sbr.rel (%p412) target = $region56
      $region55: #{genblock_forward.1} parent=39 // pred_region
        %p415 = scmp.lt.s32.totalorder %s19, 1
        %s416 = scalar_select %p415, %s19, 1
        %s417 = smul.addr %s416, 8
        %s418 = scalar_lea.vmem %s6, %s417
      $region56: #{genblock_forward.1} parent=39 // pred_fallthru
        _
      // Predicated region
      $region57: #{genblock_forward.1} parent=39 // pred_check
        %p419 = pneg %p206
      $region58: #{genblock_forward.1} parent=39 // pred_check_branch
        %421 = sbr.rel (%p419) target = $region60
      $region59: #{genblock_forward.1} parent=39 // pred_region
        %p422 = scmp.lt.s32.totalorder %s19, 1
        %s423 = scalar_select %p422, %s19, 1
        %s424 = smul.addr %s423, 8
        %s425 = scalar_lea.vmem %s7, %s424
      $region60: #{genblock_forward.1} parent=39 // pred_fallthru
        _
      // Predicated region
      $region61: #{genblock_forward.1} parent=39 // pred_check
        %p426 = pneg %p295
      $region62: #{genblock_forward.1} parent=39 // pred_check_branch
        %428 = sbr.rel (%p426) target = $region64
      $region63: #{genblock_forward.1} parent=39 // pred_region
        %p429 = scmp.lt.s32.totalorder %s19, 1
        %s430 = scalar_select %p429, %s19, 1
        %s431 = smul.addr %s430, 8
        %s432 = scalar_lea.vmem %s11, %s431
      $region64: #{genblock_forward.1} parent=39 // pred_fallthru
        _
      // Predicated region
      $region65: #{genblock_forward.1} parent=39 // pred_check
        %p433 = pneg %p321
      $region66: #{genblock_forward.1} parent=39 // pred_check_branch
        %435 = sbr.rel (%p433) target = $region68
      $region67: #{genblock_forward.1} parent=39 // pred_region
        %p436 = scmp.lt.s32.totalorder %s19, 1
        %s437 = scalar_select %p436, %s19, 1
        %s438 = smul.addr %s437, 8
        %s439 = scalar_lea.vmem %s12, %s438
      $region68: #{genblock_forward.1} parent=39 // pred_fallthru
        _
    $region40: #{genblock_forward.1} parent=5 // pred_fallthru
      _
    %p440 = scmp.le.s32.totalorder 1, %s19
    %p441 = scmp.lt.s32.totalorder %s19, 3
    %p442 = pnand %p440, %p441
    %p443 = pneg %p442
    // Predicated region
    $region69: #{genblock_forward.1} parent=5 // pred_check
      _
    $region70: #{genblock_forward.1} parent=5 // pred_check_branch
      %445 = sbr.rel (%p442) target = $region72
    $region71: #{genblock_forward.1} parent=5 // pred_region
      %s446 = ssub.s32 %s19, 1
      %p447 = scmp.lt.s32.totalorder %s24, 1
      %s448 = scalar_select %p447, %s24, 1
      %s449 = smul.addr %s448, 2
      %s450 = smul.addr %s449, 8
      %s451 = scalar_lea.vmem %s0, %s450
      %p452 = pneg %p45
      %p453 = pneg %p42
      %p454 = scmp.lt.s32.totalorder %s24, 1
      %s455 = scalar_select %p454, %s24, 1
      %s456 = smul.addr %s455, 2
      %s457 = scalar_lea.vmem %s1, %s456
      %p458 = pneg %p71
      %p459 = pneg %p68
      %p460 = scmp.lt.s32.totalorder %s24, 1
      %s461 = scalar_select %p460, %s24, 1
      %s462 = smul.addr %s461, 2
      %s463 = scalar_lea.vmem %s2, %s462
      %p464 = pneg %p97
      %p465 = pneg %p94
      %p466 = pneg %p118
      %p467 = pneg %p115
      %p468 = pneg %p139
      %p469 = pneg %p136
      %p470 = pneg %p160
      %p471 = pneg %p157
      %p472 = scmp.lt.s32.totalorder %s24, 1
      %s473 = scalar_select %p472, %s24, 1
      %s474 = smul.addr %s473, 8
      %s475 = scalar_lea.vmem %s6, %s474
      %p476 = pneg %p186
      %p477 = pneg %p183
      %p478 = scmp.lt.s32.totalorder %s24, 1
      %s479 = scalar_select %p478, %s24, 1
      %s480 = smul.addr %s479, 8
      %s481 = scalar_lea.vmem %s7, %s480
      %p482 = pneg %p212
      %p483 = pneg %p209
      %p484 = pneg %p233
      %p485 = pneg %p230
      %p486 = pneg %p254
      %p487 = pneg %p251
      %p488 = pneg %p275
      %p489 = pneg %p272
      %p490 = scmp.lt.s32.totalorder %s24, 1
      %s491 = scalar_select %p490, %s24, 1
      %s492 = smul.addr %s491, 8
      %s493 = scalar_lea.vmem %s11, %s492
      %p494 = pneg %p301
      %p495 = pneg %p298
      %p496 = scmp.lt.s32.totalorder %s24, 1
      %s497 = scalar_select %p496, %s24, 1
      %s498 = smul.addr %s497, 8
      %s499 = scalar_lea.vmem %s12, %s498
      %p500 = pneg %p327
      %p501 = pneg %p324
      %p502 = pneg %p353
      %p503 = pneg %p350
      %p504 = scmp.lt.s32.totalorder %s24, 1
      %s505 = scalar_select %p504, %s24, 1
      %s506 = smul.addr %s505, 2
      %s507 = smul.addr %s506, 8
      %s508 = scalar_lea.vmem %s13, %s507
      %p509 = scmp.lt.s32.totalorder %s24, 1
      %s510 = scalar_select %p509, %s24, 1
      %s511 = smul.addr %s510, 2
      %s512 = smul.addr %s511, 8
      %s513 = scalar_lea.vmem %s0, %s512
      %p514 = scmp.lt.s32.totalorder %s24, 1
      %s515 = scalar_select %p514, %s24, 1
      %s516 = smul.addr %s515, 2
      %s517 = scalar_lea.vmem %s1, %s516
      %p518 = scmp.lt.s32.totalorder %s24, 1
      %s519 = scalar_select %p518, %s24, 1
      %s520 = smul.addr %s519, 2
      %s521 = scalar_lea.vmem %s2, %s520
      %p522 = scmp.lt.s32.totalorder %s24, 1
      %s523 = scalar_select %p522, %s24, 1
      %s524 = smul.addr %s523, 8
      %s525 = scalar_lea.vmem %s6, %s524
      %p526 = scmp.lt.s32.totalorder %s24, 1
      %s527 = scalar_select %p526, %s24, 1
      %s528 = smul.addr %s527, 8
      %s529 = scalar_lea.vmem %s7, %s528
      %p530 = scmp.lt.s32.totalorder %s24, 1
      %s531 = scalar_select %p530, %s24, 1
      %s532 = smul.addr %s531, 8
      %s533 = scalar_lea.vmem %s11, %s532
      %p534 = scmp.lt.s32.totalorder %s24, 1
      %s535 = scalar_select %p534, %s24, 1
      %s536 = smul.addr %s535, 8
      %s537 = scalar_lea.vmem %s12, %s536
      %p538 = scmp.lt.s32.totalorder %s24, 1
      %s539 = scalar_select %p538, %s24, 1
      %s540 = smul.addr %s539, 2
      %s541 = smul.addr %s540, 8
      %s542 = scalar_lea.vmem %s13, %s541
      %v543 = vlaneseq
      %v544 = vand.u32 %v543, 127
      %v545 = vadd.s32 %v544, 128
      %vm546 = vcmp.lt.s32.totalorder %v544, 0
      %v547 = vsub.s32 0, %v544
      %v548 = vsel %vm546, %v547, %v544
      %v549 = vshrl.u32 %v548, 4
      %v550 = vand.u32 %v548, 15
      %v551 = vsub.s32 0, %v550
      %v552 = vsel %vm546, %v551, %v550
      %vm553 = vcmp.lt.s32.totalorder %v545, 0
      %v554 = vsub.s32 0, %v545
      %v555 = vsel %vm553, %v554, %v545
      %v556 = vshrl.u32 %v555, 4
      %v557 = vand.u32 %v555, 15
      %v558 = vsub.s32 0, %v557
      %v559 = vsel %vm553, %v558, %v557
      %vm560 = vcmp.ne.s32.totalorder %v552, 0
      %vm561 = vcmp.ne.s32.totalorder %v559, 0
      %vm562 = vcmp.lt.s32.totalorder %v552, 0
      %vm563 = vcmp.lt.s32.totalorder %v559, 0
      %vm564 = vmand %vm562, %vm560
      %vm565 = vmand %vm563, %vm561
      %v566 = vadd.s32 %v552, 16
      %v567 = vadd.s32 %v559, 16
      %v568 = vsel %vm564, %v566, %v552
      %v569 = vsel %vm565, %v567, %v559
      %vm570 = vcmp.ge.s32.totalorder %v568, 1
      %vm571 = vcmp.ge.s32.totalorder %v569, 1
      %vm572 = vcmp.le.s32.totalorder %v568, 14
      %vm573 = vcmp.le.s32.totalorder %v569, 14
      %574 = vst [vmem:[#allocation2] sm:$0xff] 0.0
      %575 = vst [vmem:[#allocation2 + $0x18] sm:$0xff] 0.0
      %v576 = vld [vmem:[%s513] sm:$0xff]
      %v577 = vld [vmem:[%s513 + $0x8] sm:$0xff]
      %578 = vst [vmem:[#allocation2 + $0x8] sm:$0xff] %v576
      %579 = vst [vmem:[#allocation2 + $0x10] sm:$0xff] %v577
      %v580 = vld [vmem:[#allocation2] sm:$0xff]
      %v581 = vld [vmem:[#allocation2 + $0x8] sm:$0xff]
      %v582 = vld [vmem:[#allocation2 + $0x10] sm:$0xff]
      %v583 = vsel %vm570, 1, 0
      %v584 = vsel %vm571, 1, 0
      %vm585 = vcmp.eq.s32.totalorder %v583, 1
      %vm586 = vcmp.eq.s32.totalorder %v584, 1
      %590 = vrot.lane.b32.xlu0 %v580, 17
      %v591 = vpop.permute.xlu0 %590
      %592 = vrot.lane.b32.xlu0 %v581, 17
      %v593 = vpop.permute.xlu0 %592
      %594 = vrot.lane.b32.xlu0 %v582, 17
      %v595 = vpop.permute.xlu0 %594
      %vm596 = vcmask 138240
      %v597 = vsel %vm596, %v591, %v593
      %v598 = vsel %vm596, %v593, %v595
      %v601 = vsel %vm585, %v597, 0.0
      %v602 = vsel %vm586, %v598, 0.0
      %603 = vst [vmem:[#allocation3] sm:$0xff] %v601
      %604 = vst [vmem:[#allocation3 + $0x8] sm:$0xff] %v602
      %v605 = vld [vmem:[#allocation2] sm:$0xff]
      %v606 = vld [vmem:[#allocation2 + $0x8] sm:$0xff]
      %v607 = vld [vmem:[#allocation2 + $0x10] sm:$0xff]
      %611 = vrot.lane.b32.xlu0 %v605, 16
      %v612 = vpop.permute.xlu0 %611
      %613 = vrot.lane.b32.xlu0 %v606, 16
      %v614 = vpop.permute.xlu0 %613
      %615 = vrot.lane.b32.xlu0 %v607, 16
      %v616 = vpop.permute.xlu0 %615
      %vm617 = vcmask 130048
      %v618 = vsel %vm617, %v612, %v614
      %v619 = vsel %vm617, %v614, %v616
      %622 = vst [vmem:[#allocation3 + $0x10] sm:$0xff] %v618
      %623 = vst [vmem:[#allocation3 + $0x18] sm:$0xff] %v619
      %v624 = vld [vmem:[#allocation2] sm:$0xff]
      %v625 = vld [vmem:[#allocation2 + $0x8] sm:$0xff]
      %v626 = vld [vmem:[#allocation2 + $0x10] sm:$0xff]
      %v627 = vsel %vm572, 1, 0
      %v628 = vsel %vm573, 1, 0
      %vm629 = vcmp.eq.s32.totalorder %v627, 1
      %vm630 = vcmp.eq.s32.totalorder %v628, 1
      %634 = vrot.lane.b32.xlu0 %v624, 15
      %v635 = vpop.permute.xlu0 %634
      %636 = vrot.lane.b32.xlu0 %v625, 15
      %v637 = vpop.permute.xlu0 %636
      %638 = vrot.lane.b32.xlu0 %v626, 15
      %v639 = vpop.permute.xlu0 %638
      %vm640 = vcmask 121856
      %v641 = vsel %vm640, %v635, %v637
      %v642 = vsel %vm640, %v637, %v639
      %v645 = vsel %vm629, %v641, 0.0
      %v646 = vsel %vm630, %v642, 0.0
      %647 = vst [vmem:[#allocation3 + $0x20] sm:$0xff] %v645
      %648 = vst [vmem:[#allocation3 + $0x28] sm:$0xff] %v646
      %v649 = vld [vmem:[#allocation2] sm:$0xff]
      %v650 = vld [vmem:[#allocation2 + $0x8] sm:$0xff]
      %v651 = vld [vmem:[#allocation2 + $0x10] sm:$0xff]
      %655 = vrot.lane.b32.xlu0 %v649, 1
      %v656 = vpop.permute.xlu0 %655
      %657 = vrot.lane.b32.xlu0 %v650, 1
      %v658 = vpop.permute.xlu0 %657
      %659 = vrot.lane.b32.xlu0 %v651, 1
      %v660 = vpop.permute.xlu0 %659
      %vm661 = vcmask 7168
      %v662 = vsel %vm661, %v656, %v658
      %v663 = vsel %vm661, %v658, %v660
      %v666 = vsel %vm585, %v662, 0.0
      %v667 = vsel %vm586, %v663, 0.0
      %668 = vst [vmem:[#allocation3 + $0x30] sm:$0xff] %v666
      %669 = vst [vmem:[#allocation3 + $0x38] sm:$0xff] %v667
      %v670 = vld [vmem:[#allocation2 + $0x8] sm:$0xff]
      %v671 = vld [vmem:[#allocation2 + $0x10] sm:$0xff]
      %672 = vst [vmem:[#allocation3 + $0x40] sm:$0xff] %v670
      %673 = vst [vmem:[#allocation3 + $0x48] sm:$0xff] %v671
      %v674 = vld [vmem:[#allocation2 + $0x8] sm:$0xff]
      %v675 = vld [vmem:[#allocation2 + $0x10] sm:$0xff]
      %v676 = vld [vmem:[#allocation2 + $0x18] sm:$0xff]
      %680 = vrot.lane.b32.xlu0 %v674, 127
      %v681 = vpop.permute.xlu0 %680
      %682 = vrot.lane.b32.xlu0 %v675, 127
      %v683 = vpop.permute.xlu0 %682
      %684 = vrot.lane.b32.xlu0 %v676, 127
      %v685 = vpop.permute.xlu0 %684
      %vm686 = vcmask 1039360
      %v687 = vsel %vm686, %v681, %v683
      %v688 = vsel %vm686, %v683, %v685
      %v691 = vsel %vm629, %v687, 0.0
      %v692 = vsel %vm630, %v688, 0.0
      %693 = vst [vmem:[#allocation3 + $0x50] sm:$0xff] %v691
      %694 = vst [vmem:[#allocation3 + $0x58] sm:$0xff] %v692
      %v695 = vld [vmem:[#allocation2 + $0x8] sm:$0xff]
      %v696 = vld [vmem:[#allocation2 + $0x10] sm:$0xff]
      %v697 = vld [vmem:[#allocation2 + $0x18] sm:$0xff]
      %701 = vrot.lane.b32.xlu0 %v695, 113
      %v702 = vpop.permute.xlu0 %701
      %703 = vrot.lane.b32.xlu0 %v696, 113
      %v704 = vpop.permute.xlu0 %703
      %705 = vrot.lane.b32.xlu0 %v697, 113
      %v706 = vpop.permute.xlu0 %705
      %vm707 = vcmask 924672
      %v708 = vsel %vm707, %v702, %v704
      %v709 = vsel %vm707, %v704, %v706
      %v712 = vsel %vm585, %v708, 0.0
      %v713 = vsel %vm586, %v709, 0.0
      %714 = vst [vmem:[#allocation3 + $0x60] sm:$0xff] %v712
      %715 = vst [vmem:[#allocation3 + $0x68] sm:$0xff] %v713
      %v716 = vld [vmem:[#allocation2 + $0x8] sm:$0xff]
      %v717 = vld [vmem:[#allocation2 + $0x10] sm:$0xff]
      %v718 = vld [vmem:[#allocation2 + $0x18] sm:$0xff]
      %722 = vrot.lane.b32.xlu0 %v716, 112
      %v723 = vpop.permute.xlu0 %722
      %724 = vrot.lane.b32.xlu0 %v717, 112
      %v725 = vpop.permute.xlu0 %724
      %726 = vrot.lane.b32.xlu0 %v718, 112
      %v727 = vpop.permute.xlu0 %726
      %vm728 = vcmask 916480
      %v729 = vsel %vm728, %v723, %v725
      %v730 = vsel %vm728, %v725, %v727
      %733 = vst [vmem:[#allocation3 + $0x70] sm:$0xff] %v729
      %734 = vst [vmem:[#allocation3 + $0x78] sm:$0xff] %v730
      %v735 = vld [vmem:[#allocation2 + $0x8] sm:$0xff]
      %v736 = vld [vmem:[#allocation2 + $0x10] sm:$0xff]
      %v737 = vld [vmem:[#allocation2 + $0x18] sm:$0xff]
      %741 = vrot.lane.b32.xlu0 %v735, 111
      %v742 = vpop.permute.xlu0 %741
      %743 = vrot.lane.b32.xlu0 %v736, 111
      %v744 = vpop.permute.xlu0 %743
      %745 = vrot.lane.b32.xlu0 %v737, 111
      %v746 = vpop.permute.xlu0 %745
      %vm747 = vcmask 908288
      %v748 = vsel %vm747, %v742, %v744
      %v749 = vsel %vm747, %v744, %v746
      %v752 = vsel %vm629, %v748, 0.0
      %v753 = vsel %vm630, %v749, 0.0
      %754 = vst [vmem:[#allocation3 + $0x80] sm:$0xff] %v752
      %755 = vst [vmem:[#allocation3 + $0x88] sm:$0xff] %v753
      %v756 = vld [vmem:[%s3] sm:$0xff]
      %v757 = vld [vmem:[#allocation3] sm:$0xff]
      %v758 = vld [vmem:[#allocation3 + $0x8] sm:$0xff]
      %v759 = vld [vmem:[#allocation3 + $0x10] sm:$0xff]
      %v760 = vld [vmem:[#allocation3 + $0x18] sm:$0xff]
      %v761 = vld [vmem:[#allocation3 + $0x20] sm:$0xff]
      %v762 = vld [vmem:[#allocation3 + $0x28] sm:$0xff]
      %v763 = vld [vmem:[#allocation3 + $0x30] sm:$0xff]
      %v764 = vld [vmem:[#allocation3 + $0x38] sm:$0xff]
      %v765 = vld [vmem:[#allocation3 + $0x40] sm:$0xff]
      %v766 = vld [vmem:[#allocation3 + $0x48] sm:$0xff]
      %v767 = vld [vmem:[#allocation3 + $0x50] sm:$0xff]
      %v768 = vld [vmem:[#allocation3 + $0x58] sm:$0xff]
      %v769 = vld [vmem:[#allocation3 + $0x60] sm:$0xff]
      %v770 = vld [vmem:[#allocation3 + $0x68] sm:$0xff]
      %v771 = vld [vmem:[#allocation3 + $0x70] sm:$0xff]
      %v772 = vld [vmem:[#allocation3 + $0x78] sm:$0xff]
      %v773 = vld [vmem:[#allocation3 + $0x80] sm:$0xff]
      %v774 = vld [vmem:[#allocation3 + $0x88] sm:$0xff]
      %v775 = vld [vmem:[%s4] sm:$0xff]
      %777 = vset.pattern.permute.xlu0 0
      %778 = vperm.xlu0 %777, %v775
      %v779 = vpop.permute.xlu0 %778
      %vm781 = vcmask 588800
      %v783 = vsel %vm781, %v756, 0
      %785 = vmatprep.subr.mxu0 0.0
      %786 = vmatpush1.msra.mxu0 0.0
      %787 = vmatprep.subr.mxu0 0.0
      %788 = vmatpush1.msra.mxu0 0.0
      %789 = vmatprep.subr.mxu0 0.0
      %790 = vmatpush1.msra.mxu0 0.0
      %791 = vmatprep.subr.mxu0 0.0
      %792 = vmatpush1.msra.mxu0 0.0
      %793 = vmatprep.subr.mxu0 0.0
      %794 = vmatpush1.msra.mxu0 0.0
      %795 = vmatprep.subr.mxu0 0.0
      %796 = vmatpush1.msra.mxu0 0.0
      %797 = vmatprep.subr.mxu0 0.0
      %798 = vmatpush1.msra.mxu0 0.0
      %799 = vmatprep.subr.mxu0 %v774
      %800 = vmatpush1.msra.mxu0 %v773
      %801 = vmatprep.subr.mxu0 %v772
      %802 = vmatpush1.msra.mxu0 %v771
      %803 = vmatprep.subr.mxu0 %v770
      %804 = vmatpush1.msra.mxu0 %v769
      %805 = vmatprep.subr.mxu0 %v768
      %806 = vmatpush1.msra.mxu0 %v767
      %807 = vmatprep.subr.mxu0 %v766
      %808 = vmatpush1.msra.mxu0 %v765
      %809 = vmatprep.subr.mxu0 %v764
      %810 = vmatpush1.msra.mxu0 %v763
      %811 = vmatprep.subr.mxu0 %v762
      %812 = vmatpush1.msra.mxu0 %v761
      %813 = vmatprep.subr.mxu0 %v760
      %814 = vmatpush1.msra.mxu0 %v759
      %815 = vmatprep.subr.mxu0 %v758
      %816 = vmatpush1.msra.mxu0 %v757
      %817 = vmatprep.subr.mxu0 0.0
      %818 = vmatpush2.msra.mxu0 0.0
      %819 = vmatprep.subr.mxu0 0.0
      %820 = vmatpush2.msra.mxu0 0.0
      %821 = vmatprep.subr.mxu0 0.0
      %822 = vmatpush2.msra.mxu0 0.0
      %823 = vmatprep.subr.mxu0 0.0
      %824 = vmatpush2.msra.mxu0 0.0
      %825 = vmatprep.subr.mxu0 0.0
      %826 = vmatpush2.msra.mxu0 0.0
      %827 = vmatprep.subr.mxu0 0.0
      %828 = vmatpush2.msra.mxu0 0.0
      %829 = vmatprep.subr.mxu0 0.0
      %830 = vmatpush2.msra.mxu0 0.0
      %831 = vmatprep.subr.mxu0 0.0
      %832 = vmatpush2.msra.mxu0 0.0
      %833 = vmatprep.subr.mxu0 0.0
      %834 = vmatpush2.msra.mxu0 0.0
      %835 = vmatprep.subr.mxu0 0.0
      %836 = vmatpush2.msra.mxu0 0.0
      %837 = vmatprep.subr.mxu0 0.0
      %838 = vmatpush2.msra.mxu0 0.0
      %839 = vmatprep.subr.mxu0 0.0
      %840 = vmatpush2.msra.mxu0 0.0
      %841 = vmatprep.subr.mxu0 0.0
      %842 = vmatpush2.msra.mxu0 0.0
      %843 = vmatprep.subr.mxu0 0.0
      %844 = vmatpush2.msra.mxu0 0.0
      %845 = vmatprep.subr.mxu0 0.0
      %846 = vmatpush2.msra.mxu0 0.0
      %847 = vmatprep.subr.mxu0 0.0
      %848 = vmatpush2.msra.mxu0 0.0
      %849 = vmatprep.mubr.f32.mxu0 0.0
      %850 = vmatmul.mubr.f32.gmra.mxu0 %v783
      %v851 = vpop.f32.mrf.mxu0
      %v852 = vadd.f32 %v779, %v851
      %v853 = vpop.f32.mrf.mxu0
      %v854 = vadd.f32 %v779, %v853
      %855 = vdwg.mxu0
      %v856 = vld [vmem:[%s5] sm:$0xff]
      %v857 = vld [vmem:[%s517] sm:$0x3]
      %859 = vset.pattern.permute.xlu0 0
      %860 = vperm.xlu0 %859, %v856
      %v861 = vpop.permute.xlu0 %860
      %v864 = vlaneseq
      %v865 = vshrl.u32 %v864, 7
      %v866 = vsub.s32 0, %v865
      %v867 = vrot.slane %v857, %v866
      %v868 = vlaneseq
      %v869 = vshrl.u32 %v868, 7
      %v870 = vsub.s32 1, %v869
      %v871 = vrot.slane %v857, %v870
      %v874 = vmul.f32 %v861, %v867
      %v875 = vmul.f32 %v861, %v871
      %v876 = vadd.f32 %v852, %v874
      %v877 = vadd.f32 %v854, %v875
      %vm878 = vcmp.gt.f32.partialorder %v876, 0.0
      %vm879 = vcmp.gt.f32.partialorder %v877, 0.0
      %v880 = vmul.f32 %v876, 0.2
      %v881 = vmul.f32 %v877, 0.2
      %v882 = vsel %vm878, %v876, %v880
      %v883 = vsel %vm879, %v877, %v881
      %v884 = vadd.f32 %v882, %v883
      %885 = vadd.xlane.f32.xlu0 %v884
      %v886 = vpop.xlane.xlu0 %885
      %v887 = vmul.f32 %v886, 0.00390625
      %v888 = vmul.f32 %v882, %v882
      %v889 = vmul.f32 %v883, %v883
      %v890 = vadd.f32 %v888, %v889
      %891 = vadd.xlane.f32.xlu0 %v890
      %v892 = vpop.xlane.xlu0 %891
      %v893 = vmul.f32 %v892, 0.00390625
      %v894 = vmul.f32 %v887, %v887
      %v895 = vsub.f32 %v893, %v894
      %v896 = vsub.f32 %v882, %v887
      %v897 = vsub.f32 %v883, %v887
      %v898 = vadd.f32 %v895, 1e-05
      %v899 = vrsqrt.pop %v898
      %v900 = vmul.f32 %v896, %v899
      %v901 = vmul.f32 %v897, %v899
      %v902 = vld [vmem:[%s525] sm:$0xff]
      %904 = vset.pattern.permute.xlu0 0
      %905 = vperm.xlu0 %904, %v902
      %v906 = vpop.permute.xlu0 %905
      %v908 = vmul.f32 %v906, %v900
      %v909 = vmul.f32 %v906, %v901
      %v910 = vld [vmem:[%s529] sm:$0xff]
      %912 = vset.pattern.permute.xlu0 0
      %913 = vperm.xlu0 %912, %v910
      %v914 = vpop.permute.xlu0 %913
      %v916 = vadd.f32 %v908, %v914
      %v917 = vadd.f32 %v909, %v914
      %918 = vst [vmem:[#allocation2 + $0x8] sm:$0xff] %v916
      %919 = vst [vmem:[#allocation2 + $0x10] sm:$0xff] %v917
      %v920 = vld [vmem:[#allocation2] sm:$0xff]
      %v921 = vld [vmem:[#allocation2 + $0x8] sm:$0xff]
      %v922 = vld [vmem:[#allocation2 + $0x10] sm:$0xff]
      %926 = vrot.lane.b32.xlu0 %v920, 17
      %v927 = vpop.permute.xlu0 %926
      %928 = vrot.lane.b32.xlu0 %v921, 17
      %v929 = vpop.permute.xlu0 %928
      %930 = vrot.lane.b32.xlu0 %v922, 17
      %v931 = vpop.permute.xlu0 %930
      %v932 = vsel %vm596, %v927, %v929
      %v933 = vsel %vm596, %v929, %v931
      %v936 = vsel %vm585, %v932, 0.0
      %v937 = vsel %vm586, %v933, 0.0
      %938 = vst [vmem:[#allocation3] sm:$0xff] %v936
      %939 = vst [vmem:[#allocation3 + $0x8] sm:$0xff] %v937
      %v940 = vld [vmem:[#allocation2] sm:$0xff]
      %v941 = vld [vmem:[#allocation2 + $0x8] sm:$0xff]
      %v942 = vld [vmem:[#allocation2 + $0x10] sm:$0xff]
      %946 = vrot.lane.b32.xlu0 %v940, 16
      %v947 = vpop.permute.xlu0 %946
      %948 = vrot.lane.b32.xlu0 %v941, 16
      %v949 = vpop.permute.xlu0 %948
      %950 = vrot.lane.b32.xlu0 %v942, 16
      %v951 = vpop.permute.xlu0 %950
      %v952 = vsel %vm617, %v947, %v949
      %v953 = vsel %vm617, %v949, %v951
      %956 = vst [vmem:[#allocation3 + $0x10] sm:$0xff] %v952
      %957 = vst [vmem:[#allocation3 + $0x18] sm:$0xff] %v953
      %v958 = vld [vmem:[#allocation2] sm:$0xff]
      %v959 = vld [vmem:[#allocation2 + $0x8] sm:$0xff]
      %v960 = vld [vmem:[#allocation2 + $0x10] sm:$0xff]
      %964 = vrot.lane.b32.xlu0 %v958, 15
      %v965 = vpop.permute.xlu0 %964
      %966 = vrot.lane.b32.xlu0 %v959, 15
      %v967 = vpop.permute.xlu0 %966
      %968 = vrot.lane.b32.xlu0 %v960, 15
      %v969 = vpop.permute.xlu0 %968
      %v970 = vsel %vm640, %v965, %v967
      %v971 = vsel %vm640, %v967, %v969
      %v974 = vsel %vm629, %v970, 0.0
      %v975 = vsel %vm630, %v971, 0.0
      %976 = vst [vmem:[#allocation3 + $0x20] sm:$0xff] %v974
      %977 = vst [vmem:[#allocation3 + $0x28] sm:$0xff] %v975
      %v978 = vld [vmem:[#allocation2] sm:$0xff]
      %v979 = vld [vmem:[#allocation2 + $0x8] sm:$0xff]
      %v980 = vld [vmem:[#allocation2 + $0x10] sm:$0xff]
      %984 = vrot.lane.b32.xlu0 %v978, 1
      %v985 = vpop.permute.xlu0 %984
      %986 = vrot.lane.b32.xlu0 %v979, 1
      %v987 = vpop.permute.xlu0 %986
      %988 = vrot.lane.b32.xlu0 %v980, 1
      %v989 = vpop.permute.xlu0 %988
      %v990 = vsel %vm661, %v985, %v987
      %v991 = vsel %vm661, %v987, %v989
      %v994 = vsel %vm585, %v990, 0.0
      %v995 = vsel %vm586, %v991, 0.0
      %996 = vst [vmem:[#allocation3 + $0x30] sm:$0xff] %v994
      %997 = vst [vmem:[#allocation3 + $0x38] sm:$0xff] %v995
      %v998 = vld [vmem:[#allocation2 + $0x8] sm:$0xff]
      %v999 = vld [vmem:[#allocation2 + $0x10] sm:$0xff]
      %1000 = vst [vmem:[#allocation3 + $0x40] sm:$0xff] %v998
      %1001 = vst [vmem:[#allocation3 + $0x48] sm:$0xff] %v999
      %v1002 = vld [vmem:[#allocation2 + $0x8] sm:$0xff]
      %v1003 = vld [vmem:[#allocation2 + $0x10] sm:$0xff]
      %v1004 = vld [vmem:[#allocation2 + $0x18] sm:$0xff]
      %1008 = vrot.lane.b32.xlu0 %v1002, 127
      %v1009 = vpop.permute.xlu0 %1008
      %1010 = vrot.lane.b32.xlu0 %v1003, 127
      %v1011 = vpop.permute.xlu0 %1010
      %1012 = vrot.lane.b32.xlu0 %v1004, 127
      %v1013 = vpop.permute.xlu0 %1012
      %v1014 = vsel %vm686, %v1009, %v1011
      %v1015 = vsel %vm686, %v1011, %v1013
      %v1018 = vsel %vm629, %v1014, 0.0
      %v1019 = vsel %vm630, %v1015, 0.0
      %1020 = vst [vmem:[#allocation3 + $0x50] sm:$0xff] %v1018
      %1021 = vst [vmem:[#allocation3 + $0x58] sm:$0xff] %v1019
      %v1022 = vld [vmem:[#allocation2 + $0x8] sm:$0xff]
      %v1023 = vld [vmem:[#allocation2 + $0x10] sm:$0xff]
      %v1024 = vld [vmem:[#allocation2 + $0x18] sm:$0xff]
      %1028 = vrot.lane.b32.xlu0 %v1022, 113
      %v1029 = vpop.permute.xlu0 %1028
      %1030 = vrot.lane.b32.xlu0 %v1023, 113
      %v1031 = vpop.permute.xlu0 %1030
      %1032 = vrot.lane.b32.xlu0 %v1024, 113
      %v1033 = vpop.permute.xlu0 %1032
      %v1034 = vsel %vm707, %v1029, %v1031
      %v1035 = vsel %vm707, %v1031, %v1033
      %v1038 = vsel %vm585, %v1034, 0.0
      %v1039 = vsel %vm586, %v1035, 0.0
      %1040 = vst [vmem:[#allocation3 + $0x60] sm:$0xff] %v1038
      %1041 = vst [vmem:[#allocation3 + $0x68] sm:$0xff] %v1039
      %v1042 = vld [vmem:[#allocation2 + $0x8] sm:$0xff]
      %v1043 = vld [vmem:[#allocation2 + $0x10] sm:$0xff]
      %v1044 = vld [vmem:[#allocation2 + $0x18] sm:$0xff]
      %1048 = vrot.lane.b32.xlu0 %v1042, 112
      %v1049 = vpop.permute.xlu0 %1048
      %1050 = vrot.lane.b32.xlu0 %v1043, 112
      %v1051 = vpop.permute.xlu0 %1050
      %1052 = vrot.lane.b32.xlu0 %v1044, 112
      %v1053 = vpop.permute.xlu0 %1052
      %v1054 = vsel %vm728, %v1049, %v1051
      %v1055 = vsel %vm728, %v1051, %v1053
      %1058 = vst [vmem:[#allocation3 + $0x70] sm:$0xff] %v1054
      %1059 = vst [vmem:[#allocation3 + $0x78] sm:$0xff] %v1055
      %v1060 = vld [vmem:[#allocation2 + $0x8] sm:$0xff]
      %v1061 = vld [vmem:[#allocation2 + $0x10] sm:$0xff]
      %v1062 = vld [vmem:[#allocation2 + $0x18] sm:$0xff]
      %1066 = vrot.lane.b32.xlu0 %v1060, 111
      %v1067 = vpop.permute.xlu0 %1066
      %1068 = vrot.lane.b32.xlu0 %v1061, 111
      %v1069 = vpop.permute.xlu0 %1068
      %1070 = vrot.lane.b32.xlu0 %v1062, 111
      %v1071 = vpop.permute.xlu0 %1070
      %v1072 = vsel %vm747, %v1067, %v1069
      %v1073 = vsel %vm747, %v1069, %v1071
      %v1076 = vsel %vm629, %v1072, 0.0
      %v1077 = vsel %vm630, %v1073, 0.0
      %1078 = vst [vmem:[#allocation3 + $0x80] sm:$0xff] %v1076
      %1079 = vst [vmem:[#allocation3 + $0x88] sm:$0xff] %v1077
      %v1080 = vld [vmem:[%s8] sm:$0xff]
      %v1081 = vld [vmem:[#allocation3] sm:$0xff]
      %v1082 = vld [vmem:[#allocation3 + $0x8] sm:$0xff]
      %v1083 = vld [vmem:[#allocation3 + $0x10] sm:$0xff]
      %v1084 = vld [vmem:[#allocation3 + $0x18] sm:$0xff]
      %v1085 = vld [vmem:[#allocation3 + $0x20] sm:$0xff]
      %v1086 = vld [vmem:[#allocation3 + $0x28] sm:$0xff]
      %v1087 = vld [vmem:[#allocation3 + $0x30] sm:$0xff]
      %v1088 = vld [vmem:[#allocation3 + $0x38] sm:$0xff]
      %v1089 = vld [vmem:[#allocation3 + $0x40] sm:$0xff]
      %v1090 = vld [vmem:[#allocation3 + $0x48] sm:$0xff]
      %v1091 = vld [vmem:[#allocation3 + $0x50] sm:$0xff]
      %v1092 = vld [vmem:[#allocation3 + $0x58] sm:$0xff]
      %v1093 = vld [vmem:[#allocation3 + $0x60] sm:$0xff]
      %v1094 = vld [vmem:[#allocation3 + $0x68] sm:$0xff]
      %v1095 = vld [vmem:[#allocation3 + $0x70] sm:$0xff]
      %v1096 = vld [vmem:[#allocation3 + $0x78] sm:$0xff]
      %v1097 = vld [vmem:[#allocation3 + $0x80] sm:$0xff]
      %v1098 = vld [vmem:[#allocation3 + $0x88] sm:$0xff]
      %v1099 = vld [vmem:[%s9] sm:$0xff]
      %1101 = vset.pattern.permute.xlu0 0
      %1102 = vperm.xlu0 %1101, %v1099
      %v1103 = vpop.permute.xlu0 %1102
      %v1106 = vsel %vm781, %v1080, 0
      %1108 = vmatprep.subr.mxu0 0.0
      %1109 = vmatpush1.msra.mxu0 0.0
      %1110 = vmatprep.subr.mxu0 0.0
      %1111 = vmatpush1.msra.mxu0 0.0
      %1112 = vmatprep.subr.mxu0 0.0
      %1113 = vmatpush1.msra.mxu0 0.0
      %1114 = vmatprep.subr.mxu0 0.0
      %1115 = vmatpush1.msra.mxu0 0.0
      %1116 = vmatprep.subr.mxu0 0.0
      %1117 = vmatpush1.msra.mxu0 0.0
      %1118 = vmatprep.subr.mxu0 0.0
      %1119 = vmatpush1.msra.mxu0 0.0
      %1120 = vmatprep.subr.mxu0 0.0
      %1121 = vmatpush1.msra.mxu0 0.0
      %1122 = vmatprep.subr.mxu0 %v1098
      %1123 = vmatpush1.msra.mxu0 %v1097
      %1124 = vmatprep.subr.mxu0 %v1096
      %1125 = vmatpush1.msra.mxu0 %v1095
      %1126 = vmatprep.subr.mxu0 %v1094
      %1127 = vmatpush1.msra.mxu0 %v1093
      %1128 = vmatprep.subr.mxu0 %v1092
      %1129 = vmatpush1.msra.mxu0 %v1091
      %1130 = vmatprep.subr.mxu0 %v1090
      %1131 = vmatpush1.msra.mxu0 %v1089
      %1132 = vmatprep.subr.mxu0 %v1088
      %1133 = vmatpush1.msra.mxu0 %v1087
      %1134 = vmatprep.subr.mxu0 %v1086
      %1135 = vmatpush1.msra.mxu0 %v1085
      %1136 = vmatprep.subr.mxu0 %v1084
      %1137 = vmatpush1.msra.mxu0 %v1083
      %1138 = vmatprep.subr.mxu0 %v1082
      %1139 = vmatpush1.msra.mxu0 %v1081
      %1140 = vmatprep.subr.mxu0 0.0
      %1141 = vmatpush2.msra.mxu0 0.0
      %1142 = vmatprep.subr.mxu0 0.0
      %1143 = vmatpush2.msra.mxu0 0.0
      %1144 = vmatprep.subr.mxu0 0.0
      %1145 = vmatpush2.msra.mxu0 0.0
      %1146 = vmatprep.subr.mxu0 0.0
      %1147 = vmatpush2.msra.mxu0 0.0
      %1148 = vmatprep.subr.mxu0 0.0
      %1149 = vmatpush2.msra.mxu0 0.0
      %1150 = vmatprep.subr.mxu0 0.0
      %1151 = vmatpush2.msra.mxu0 0.0
      %1152 = vmatprep.subr.mxu0 0.0
      %1153 = vmatpush2.msra.mxu0 0.0
      %1154 = vmatprep.subr.mxu0 0.0
      %1155 = vmatpush2.msra.mxu0 0.0
      %1156 = vmatprep.subr.mxu0 0.0
      %1157 = vmatpush2.msra.mxu0 0.0
      %1158 = vmatprep.subr.mxu0 0.0
      %1159 = vmatpush2.msra.mxu0 0.0
      %1160 = vmatprep.subr.mxu0 0.0
      %1161 = vmatpush2.msra.mxu0 0.0
      %1162 = vmatprep.subr.mxu0 0.0
      %1163 = vmatpush2.msra.mxu0 0.0
      %1164 = vmatprep.subr.mxu0 0.0
      %1165 = vmatpush2.msra.mxu0 0.0
      %1166 = vmatprep.subr.mxu0 0.0
      %1167 = vmatpush2.msra.mxu0 0.0
      %1168 = vmatprep.subr.mxu0 0.0
      %1169 = vmatpush2.msra.mxu0 0.0
      %1170 = vmatprep.subr.mxu0 0.0
      %1171 = vmatpush2.msra.mxu0 0.0
      %1172 = vmatprep.mubr.f32.mxu0 0.0
      %1173 = vmatmul.mubr.f32.gmra.mxu0 %v1106
      %v1174 = vpop.f32.mrf.mxu0
      %v1175 = vadd.f32 %v1103, %v1174
      %v1176 = vpop.f32.mrf.mxu0
      %v1177 = vadd.f32 %v1103, %v1176
      %1178 = vdwg.mxu0
      %v1179 = vld [vmem:[%s10] sm:$0xff]
      %v1180 = vld [vmem:[%s521] sm:$0x3]
      %1182 = vset.pattern.permute.xlu0 0
      %1183 = vperm.xlu0 %1182, %v1179
      %v1184 = vpop.permute.xlu0 %1183
      %v1187 = vlaneseq
      %v1188 = vshrl.u32 %v1187, 7
      %v1189 = vsub.s32 0, %v1188
      %v1190 = vrot.slane %v1180, %v1189
      %v1191 = vlaneseq
      %v1192 = vshrl.u32 %v1191, 7
      %v1193 = vsub.s32 1, %v1192
      %v1194 = vrot.slane %v1180, %v1193
      %v1197 = vmul.f32 %v1184, %v1190
      %v1198 = vmul.f32 %v1184, %v1194
      %v1199 = vadd.f32 %v1175, %v1197
      %v1200 = vadd.f32 %v1177, %v1198
      %vm1201 = vcmp.gt.f32.partialorder %v1199, 0.0
      %vm1202 = vcmp.gt.f32.partialorder %v1200, 0.0
      %v1203 = vmul.f32 %v1199, 0.2
      %v1204 = vmul.f32 %v1200, 0.2
      %v1205 = vsel %vm1201, %v1199, %v1203
      %v1206 = vsel %vm1202, %v1200, %v1204
      %v1207 = vadd.f32 %v1205, %v1206
      %1208 = vadd.xlane.f32.xlu0 %v1207
      %v1209 = vpop.xlane.xlu0 %1208
      %v1210 = vmul.f32 %v1209, 0.00390625
      %v1211 = vmul.f32 %v1205, %v1205
      %v1212 = vmul.f32 %v1206, %v1206
      %v1213 = vadd.f32 %v1211, %v1212
      %1214 = vadd.xlane.f32.xlu0 %v1213
      %v1215 = vpop.xlane.xlu0 %1214
      %v1216 = vmul.f32 %v1215, 0.00390625
      %v1217 = vmul.f32 %v1210, %v1210
      %v1218 = vsub.f32 %v1216, %v1217
      %v1219 = vsub.f32 %v1205, %v1210
      %v1220 = vsub.f32 %v1206, %v1210
      %v1221 = vadd.f32 %v1218, 1e-05
      %v1222 = vrsqrt.pop %v1221
      %v1223 = vmul.f32 %v1219, %v1222
      %v1224 = vmul.f32 %v1220, %v1222
      %v1225 = vld [vmem:[%s533] sm:$0xff]
      %1227 = vset.pattern.permute.xlu0 0
      %1228 = vperm.xlu0 %1227, %v1225
      %v1229 = vpop.permute.xlu0 %1228
      %v1231 = vmul.f32 %v1229, %v1223
      %v1232 = vmul.f32 %v1229, %v1224
      %v1233 = vld [vmem:[%s537] sm:$0xff]
      %1235 = vset.pattern.permute.xlu0 0
      %1236 = vperm.xlu0 %1235, %v1233
      %v1237 = vpop.permute.xlu0 %1236
      %v1239 = vadd.f32 %v1231, %v1237
      %v1240 = vadd.f32 %v1232, %v1237
      %1241 = vst [vmem:[%s542] sm:$0xff] %v1239
      %1242 = vst [vmem:[%s542 + $0x8] sm:$0xff] %v1240
      %p1243 = scmp.lt.s32.totalorder %s24, 1
      %s1244 = scalar_select %p1243, %s24, 1
      %s1245 = smul.addr %s1244, 2
      %s1246 = smul.addr %s1245, 8
      %s1247 = scalar_lea.vmem %s13, %s1246
      // Predicated region
      $region73: #{genblock_forward.1} parent=71 // pred_check
        %p1248 = pneg %p350
      $region74: #{genblock_forward.1} parent=71 // pred_check_branch
        %1250 = sbr.rel (%p1248) target = $region76
      $region75: #{genblock_forward.1} parent=71 // pred_region
        _
      $region76: #{genblock_forward.1} parent=71 // pred_fallthru
        _
    $region72: #{genblock_forward.1} parent=5 // pred_fallthru
      _
    %p1251 = scmp.le.s32.totalorder 2, %s19
    // Predicated region
    $region77: #{genblock_forward.1} parent=5 // pred_check
      %p1252 = pneg %p1251
    $region78: #{genblock_forward.1} parent=5 // pred_check_branch
      %1254 = sbr.rel (%p1252) target = $region80
    $region79: #{genblock_forward.1} parent=5 // pred_region
      %s1255 = ssub.s32 %s19, 2
      // Predicated region
      $region81: #{genblock_forward.1} parent=79 // pred_check
        %p1256 = pneg %p356
      $region82: #{genblock_forward.1} parent=79 // pred_check_branch
        %1258 = sbr.rel (%p1256) target = $region84
      $region83: #{genblock_forward.1} parent=79 // pred_region
        %p1259 = scmp.lt.s32.totalorder %s25, 1
        %s1260 = scalar_select %p1259, %s25, 1
        %s1261 = smul.addr %s1260, 2
        %s1262 = smul.addr %s1261, 8
        %s1263 = scalar_lea.vmem %s13, %s1262
      $region84: #{genblock_forward.1} parent=79 // pred_fallthru
        _
    $region80: #{genblock_forward.1} parent=5 // pred_fallthru
      _
  $region6: #{genblock_forward.1} parent=0 // loop_footer
    %s23 = sadd.s32 1, %s19
  $region7: #{genblock_forward.1} parent=0 // loop_footer_branch
    %18 = sbr.rel target = $region3
  $region8: #{genblock_forward.1} parent=0 // loop_exit
    _

</llo_original>
